<compile_context>
chip_gen: v7x
topology: tpu7x:2x2x1
jax: 0.10.0
libtpu: 0.0.40
codegen_flags: <defaults>
</compile_context>

<pallas_src>
import functools
import math

import jax
import jax.numpy as jnp
from jax import lax
from jax.experimental import pallas as pl
from jax.experimental.pallas import tpu as pltpu


# ----------------------------------------------------------------------------
# Deterministic parameter init (mirrors nn.init.orthogonal_ + constant bias)
# ----------------------------------------------------------------------------
def orthogonal_init(key, out_dim, in_dim, gain=1.0):
    """torch.nn.init.orthogonal_ equivalent for a (out_dim, in_dim) weight."""
    rows, cols = out_dim, in_dim
    a = jax.random.normal(key, (rows, cols) if rows >= cols else (cols, rows),
                          dtype=jnp.float32)
    q, r = jnp.linalg.qr(a)
    q = q * jnp.sign(jnp.diag(r))
    if rows < cols:
        q = q.T
    return (gain * q).astype(jnp.float32)


def make_raw_params(key, state_dim, action_dim):
    """Torch-layout (out_features, in_features) weights + (out,) biases."""
    keys = jax.random.split(key, 6)
    bias = lambda n: jnp.full((n,), 0.001, dtype=jnp.float32)
    return dict(
        # actor: Linear(S,128) Tanh Linear(128,64) Tanh Linear(64,A) Tanh
        aw1=orthogonal_init(keys[0], 128, state_dim, gain=1.0), ab1=bias(128),
        aw2=orthogonal_init(keys[1], 64, 128, gain=1.0),        ab2=bias(64),
        aw3=orthogonal_init(keys[2], action_dim, 64, gain=0.01), ab3=bias(action_dim),
        # critic: Linear(S,128) Tanh Linear(128,64) Tanh Linear(64,1)
        cw1=orthogonal_init(keys[3], 128, state_dim, gain=1.0), cb1=bias(128),
        cw2=orthogonal_init(keys[4], 64, 128, gain=1.0),        cb2=bias(64),
        cw3=orthogonal_init(keys[5], 1, 64, gain=1.0),          cb3=bias(1),
    )


def fuse_params(raw, compute_dtype=jnp.bfloat16):
    """Pack actor+critic into fused weights for the transposed (W @ x^T) kernel.

    Layer 1:  (256, S)    = concat(actor_w1, critic_w1)
    Layer 2:  (128, 256)  = blockdiag(actor_w2, critic_w2)
    Heads:    (H, 128)    with H a full sublane multiple (>= 8):
              rows [0, A)  actor head,  row A  critic head,
              row A+1      reserved for the log-prob constant (set at eval time),
              remaining    zero padding.
    Biases stay f32 (added to the f32 MXU accumulators).
    """
    ad = raw["aw3"].shape[0]
    head_rows = max(8, -(-(ad + 2) // 8) * 8)
    w1 = jnp.concatenate([raw["aw1"], raw["cw1"]], axis=0)            # (256, S)
    b1 = jnp.concatenate([raw["ab1"], raw["cb1"]])[:, None]           # (256, 1)
    w2 = jnp.zeros((128, 256), jnp.float32)
    w2 = w2.at[:64, :128].set(raw["aw2"]).at[64:, 128:].set(raw["cw2"])
    b2 = jnp.concatenate([raw["ab2"], raw["cb2"]])[:, None]           # (128, 1)
    w3 = jnp.zeros((head_rows, 128), jnp.float32)
    w3 = w3.at[:ad, :64].set(raw["aw3"]).at[ad, 64:].set(raw["cw3"][0])
    b3 = jnp.zeros((head_rows, 1), jnp.float32)
    b3 = b3.at[:ad, 0].set(raw["ab3"]).at[ad, 0].set(raw["cb3"][0])
    return dict(
        w1=w1.astype(compute_dtype), b1=b1,
        w2=w2.astype(compute_dtype), b2=b2,
        w3=w3.astype(compute_dtype), b3=b3,
    )


# ----------------------------------------------------------------------------
# Generation-dependent knobs
# ----------------------------------------------------------------------------
def _default_tanh_dtype():
    """bf16 tanh on chips with a bf16 EUP (v6e / v7x); f32 elsewhere (v5e/v5p/v4)."""
    try:
        kind = jax.devices()[0].device_kind.lower()
    except Exception:
        kind = ""
    if ("v6" in kind) or ("v7" in kind) or ("7x" in kind):
        return jnp.bfloat16
    return jnp.float32


def _choose_block_b(batch, block_b):
    """Lane-multiple batch tile; keep >= 2 (even) blocks so both v7x TCs work."""
    block_b = max(128, (int(block_b) // 128) * 128)
    if batch > 256:
        n = max(2, pl.cdiv(batch, block_b))
        if n % 2:
            n += 1
        block_b = min(block_b, ((pl.cdiv(batch, n) + 127) // 128) * 128)
    return block_b


# ----------------------------------------------------------------------------
# Pallas kernel: fused actor+critic MLP + diag-MVN log_prob (transposed form)
# ----------------------------------------------------------------------------
def ppo_evaluate_kernel(s_ref, a_ref,
                        w1_ref, b1_ref, w2_ref, b2_ref, w3_ref, b3_ref,
                        inv_var_ref, out_ref, *, action_dim, tanh_dtype):
    cd = w1_ref.dtype                                    # bf16 matmul dtype

    # Layer 1 (fused actor|critic): contract w1 (256, S) with the row-major
    # state tile (Bt, S) on the trailing S axis -> (256, Bt). Lane-dense in the
    # batch; no wrapper-side transpose / padding of s needed.
    acc = lax.dot_general(w1_ref[...], s_ref[...].astype(cd),
                          (((1,), (1,)), ((), ())),
                          preferred_element_type=jnp.float32)
    h = jnp.tanh((acc + b1_ref[...]).astype(tanh_dtype)).astype(cd)

    # Layer 2 (block-diag actor|critic): (128, 256) @ (256, Bt) -> (128, Bt).
    acc = jnp.dot(w2_ref[...], h, preferred_element_type=jnp.float32)
    h = jnp.tanh((acc + b2_ref[...]).astype(tanh_dtype)).astype(cd)

    # Fused heads on a full 8-sublane tile: (8, 128) @ (128, Bt) -> (8, Bt).
    # Row layout: [actor mu (A) | critic v (1) | log-prob const (1) | zeros].
    z = jnp.dot(w3_ref[...], h, preferred_element_type=jnp.float32) + b3_ref[...]

    mu = jnp.tanh(z[:action_dim, :])                     # (A, Bt) actor Tanh head, f32
    v = z[action_dim:action_dim + 1, :]                  # (1, Bt) critic (linear)
    logp_const = z[action_dim + 1:action_dim + 2, :]     # (1, Bt) -0.5*(logdet+d*log 2pi)

    diff = a_ref[...] - mu                               # (A, Bt) f32
    maha = jnp.sum(diff * diff * inv_var_ref[...], axis=0, keepdims=True)   # (1, Bt)

    out_ref[0:1, :] = logp_const - 0.5 * maha            # action log-prob
    out_ref[1:2, :] = v                                  # state value


def ppo_evaluate(s, a, fused, action_var, *, block_b=1024, tanh_dtype=None):
    """Pallas-backed PPOActorCritic.evaluate(s, a).

    Returns (action_logprobs (B,), state_values (B,1), dist_entropy (B,)).
    block_b: batch tile on the lane axis (multiple of 128). 1024-2048 amortizes
    the ~0.35 us per-grid-step overhead; the helper shrinks it so v7x's two
    TensorCores both get work and VMEM stays far below the 64 MiB v7x limit.
    """
    B, state_dim = s.shape
    action_dim = a.shape[-1]
    if tanh_dtype is None:
        tanh_dtype = _default_tanh_dtype()
    block_b = _choose_block_b(B, block_b)
    n_blocks = pl.cdiv(B, block_b)
    Bp = n_blocks * block_b

    var = jnp.broadcast_to(jnp.asarray(action_var, jnp.float32).reshape(-1),
                           (action_dim,))
    inv_var = (1.0 / var).reshape(action_dim, 1)                    # (A, 1)
    logdet = jnp.sum(jnp.log(var))
    logp_const = -0.5 * (logdet + action_dim * math.log(2.0 * math.pi))

    # The log-prob constant rides on a spare zero-weight row of the fused head
    # bias: z[action_dim+1, :] == logp_const, broadcast over batch lanes for free.
    b3 = fused["b3"].at[action_dim + 1, 0].set(logp_const)

    # Tiny relayout (A x B elements, fused by XLA); no batch padding copies.
    aT = a.astype(jnp.float32).T                                    # (A, B)

    resident = lambda arr: pl.BlockSpec(arr.shape, lambda i: (0, 0))
    kernel = functools.partial(ppo_evaluate_kernel,
                               action_dim=action_dim, tanh_dtype=tanh_dtype)

    head_rows = fused["w3"].shape[0]
    itemsize = fused["w1"].dtype.itemsize
    flops = 2 * Bp * (256 * state_dim + 128 * 256 + head_rows * 128)
    trans = Bp * (256 + 128 + action_dim)
    w_bytes = itemsize * (fused["w1"].size + fused["w2"].size + fused["w3"].size) \
        + 4 * (fused["b1"].size + fused["b2"].size + b3.size + inv_var.size)
    io_bytes = Bp * (state_dim * 4 + action_dim * 4 + 2 * 4) + int(w_bytes)

    # ~3 KB of live intermediates per batch lane plus double-buffered s/a/out
    # tiles and the resident weights; never below the smallest (v5e) default
    # scoped limit, capped with headroom under v7x's 64 MiB physical VMEM.
    vmem_limit = int(min(48 << 20, max(16 << 20, 3584 * block_b + (2 << 20))))

    out = pl.pallas_call(
        kernel,
        out_shape=jax.ShapeDtypeStruct((2, B), jnp.float32),
        grid_spec=pltpu.PrefetchScalarGridSpec(
            num_scalar_prefetch=0,
            grid=(n_blocks,),
            in_specs=[
                pl.BlockSpec((block_b, state_dim), lambda i: (i, 0)),   # s tile (row-major)
                pl.BlockSpec((action_dim, block_b), lambda i: (0, i)),  # a^T tile
                resident(fused["w1"]), resident(fused["b1"]),
                resident(fused["w2"]), resident(fused["b2"]),
                resident(fused["w3"]), resident(b3),
                resident(inv_var),
            ],
            out_specs=pl.BlockSpec((2, block_b), lambda i: (0, i)),
        ),
        compiler_params=pltpu.CompilerParams(
            dimension_semantics=("parallel",),
            vmem_limit_bytes=vmem_limit),
        cost_estimate=pl.CostEstimate(
            flops=int(flops), transcendentals=int(trans),
            bytes_accessed=int(io_bytes)),
    )(s, aT, fused["w1"], fused["b1"], fused["w2"], fused["b2"],
      fused["w3"], b3, inv_var)

    logp = out[0, :]                                      # (B,)
    val = out[1, :].reshape(B, 1)                         # (B, 1)
    # entropy is batch-independent -> compute & broadcast in the wrapper
    ent_scalar = 0.5 * action_dim * (1.0 + math.log(2.0 * math.pi)) + 0.5 * logdet
    ent = jnp.broadcast_to(ent_scalar.astype(jnp.float32), (B,))
    return logp, val, ent


# ----------------------------------------------------------------------------
# Pure-JAX references
# ----------------------------------------------------------------------------
def reference_unfused(s, a, raw, action_var):
    """Straight torch-style f32 forward (validates the fused weight packing)."""
    h = jnp.tanh(s @ raw["aw1"].T + raw["ab1"])
    h = jnp.tanh(h @ raw["aw2"].T + raw["ab2"])
    mu = jnp.tanh(h @ raw["aw3"].T + raw["ab3"])
    c = jnp.tanh(s @ raw["cw1"].T + raw["cb1"])
    c = jnp.tanh(c @ raw["cw2"].T + raw["cb2"])
    v = c @ raw["cw3"].T + raw["cb3"]
    d = a.shape[-1]
    var = jnp.broadcast_to(jnp.asarray(action_var, jnp.float32).reshape(-1),
                           (d,)).reshape(1, d)
    logdet = jnp.sum(jnp.log(var), axis=-1)
    maha = jnp.sum((a - mu) ** 2 / var, axis=-1)
    logp = -0.5 * (maha + logdet + d * math.log(2.0 * math.pi))
    ent = 0.5 * d * (1.0 + math.log(2.0 * math.pi)) + 0.5 * logdet
    return logp, v, jnp.broadcast_to(ent, (s.shape[0],))


def reference_fused(s, a, fused, action_var, tanh_dtype=jnp.float32):
    """Same fused / transposed math and dtype flow as the kernel (no Pallas)."""
    cd = fused["w1"].dtype
    ad = a.shape[-1]
    acc = lax.dot_general(fused["w1"], s.astype(cd), (((1,), (1,)), ((), ())),
                          preferred_element_type=jnp.float32)
    h = jnp.tanh((acc + fused["b1"]).astype(tanh_dtype)).astype(cd)
    acc = jnp.dot(fused["w2"], h, preferred_element_type=jnp.float32)
    h = jnp.tanh((acc + fused["b2"]).astype(tanh_dtype)).astype(cd)
    z = jnp.dot(fused["w3"], h, preferred_element_type=jnp.float32) + fused["b3"]
    mu = jnp.tanh(z[:ad, :])
    v = z[ad:ad + 1, :]
    var = jnp.broadcast_to(jnp.asarray(action_var, jnp.float32).reshape(-1),
                           (ad,)).reshape(ad, 1)
    diff = a.astype(jnp.float32).T - mu
    maha = jnp.sum(diff * diff / var, axis=0)
    logdet = jnp.sum(jnp.log(var))
    logp = -0.5 * (maha + logdet + ad * math.log(2.0 * math.pi))
    ent = 0.5 * ad * (1.0 + math.log(2.0 * math.pi)) + 0.5 * logdet
    return logp, v.T, jnp.broadcast_to(ent, (s.shape[0],))


if __name__ == "__main__":
    STATE_DIM = 8
    ACTION_DIM = 2
    BATCH = 2600          # several tiles + a ragged last block (no host-side pad)
    ACTION_STD_INIT = 0.6

    key = jax.random.PRNGKey(0)
    kp, ks, ka = jax.random.split(key, 3)

    raw = make_raw_params(kp, STATE_DIM, ACTION_DIM)
    action_var = jnp.full((ACTION_DIM,), ACTION_STD_INIT ** 2, dtype=jnp.float32)

    s = jax.random.normal(ks, (BATCH, STATE_DIM), dtype=jnp.float32)
    a = jax.random.normal(ka, (BATCH, ACTION_DIM), dtype=jnp.float32)

    # 1) packing sanity: fused f32 forward == unfused torch-style forward
    fused_f32 = fuse_params(raw, jnp.float32)
    lf, vf, ef = reference_fused(s, a, fused_f32, action_var, tanh_dtype=jnp.float32)
    lu, vu, eu = reference_unfused(s, a, raw, action_var)
    assert jnp.allclose(lf, lu, atol=1e-4), "fused packing: log_prob mismatch"
    assert jnp.allclose(vf, vu, atol=1e-4), "fused packing: value mismatch"
    assert jnp.allclose(ef, eu, atol=1e-5), "fused packing: entropy mismatch"

    # 2) Pallas kernel (bf16 matmul inputs, f32 accumulate; bf16 tanh on v6e/v7x)
    tanh_dtype = _default_tanh_dtype()
    fused_bf16 = fuse_params(raw, jnp.bfloat16)
    logp, val, ent = ppo_evaluate(s, a, fused_bf16, action_var, tanh_dtype=tanh_dtype)
    jax.block_until_ready((logp, val, ent))

    rl, rv, re = reference_fused(s, a, fused_bf16, action_var, tanh_dtype=tanh_dtype)
    assert logp.shape == (BATCH,) and val.shape == (BATCH, 1) and ent.shape == (BATCH,)
    # tolerance covers Mosaic-native vs XLA tanh implementation differences at bf16
    assert jnp.allclose(logp, rl, atol=5e-2, rtol=3e-2), "log_prob mismatch"
    assert jnp.allclose(val, rv, atol=5e-2, rtol=3e-2), "state_value mismatch"
    assert jnp.allclose(ent, re, atol=1e-5), "entropy mismatch"

    print("KERNEL_OK")
</pallas_src>

<mosaic_0001>
module attributes {stable_mosaic.version = 11 : i64} {
  func.func @ppo_evaluate_kernel(%arg0: i32, %arg1: memref<768x8xf32, #tpu.memory_space<vmem>>, %arg2: memref<2x768xf32, #tpu.memory_space<vmem>>, %arg3: memref<256x8xbf16, #tpu.memory_space<vmem>>, %arg4: memref<256x1xf32, #tpu.memory_space<vmem>>, %arg5: memref<128x256xbf16, #tpu.memory_space<vmem>>, %arg6: memref<128x1xf32, #tpu.memory_space<vmem>>, %arg7: memref<8x128xbf16, #tpu.memory_space<vmem>>, %arg8: memref<8x1xf32, #tpu.memory_space<vmem>>, %arg9: memref<2x1xf32, #tpu.memory_space<vmem>>, %arg10: memref<2x768xf32, #tpu.memory_space<vmem>>) attributes {dimension_semantics = [#tpu.dimension_semantics<parallel>], iteration_bounds = array<i64: 4>, scalar_prefetch = 0 : i64, scratch_operands = 0 : i64, tpu.core_type = #tpu.core_type<tc>, window_params = [{transform_indices = @transform_0, window_bounds = array<i64: 768, 8>}, {transform_indices = @transform_1, window_bounds = array<i64: 2, 768>}, {pipeline_mode = #tpu.pipeline_mode<synchronous>, transform_indices = @transform_2, window_bounds = array<i64: 256, 8>}, {pipeline_mode = #tpu.pipeline_mode<synchronous>, transform_indices = @transform_3, window_bounds = array<i64: 256, 1>}, {pipeline_mode = #tpu.pipeline_mode<synchronous>, transform_indices = @transform_4, window_bounds = array<i64: 128, 256>}, {pipeline_mode = #tpu.pipeline_mode<synchronous>, transform_indices = @transform_5, window_bounds = array<i64: 128, 1>}, {pipeline_mode = #tpu.pipeline_mode<synchronous>, transform_indices = @transform_6, window_bounds = array<i64: 8, 128>}, {pipeline_mode = #tpu.pipeline_mode<synchronous>, transform_indices = @transform_7, window_bounds = array<i64: 8, 1>}, {pipeline_mode = #tpu.pipeline_mode<synchronous>, transform_indices = @transform_8, window_bounds = array<i64: 2, 1>}, {transform_indices = @transform_9, window_bounds = array<i64: 2, 768>}]} {
    %c0 = arith.constant 0 : index
    %c0_0 = arith.constant 0 : index
    %0 = vector.load %arg3[%c0, %c0_0] : memref<256x8xbf16, #tpu.memory_space<vmem>>, vector<256x8xbf16>
    %c0_1 = arith.constant 0 : index
    %c0_2 = arith.constant 0 : index
    %1 = vector.load %arg1[%c0_1, %c0_2] : memref<768x8xf32, #tpu.memory_space<vmem>>, vector<768x8xf32>
    %2 = arith.truncf %1 : vector<768x8xf32> to vector<768x8xbf16>
    %cst = arith.constant dense<0.000000e+00> : vector<256x768xf32>
    %3 = tpu.matmul %0, %2, %cst {dimension_numbers = #tpu.dot_dimension_numbers<[1], [1], [0], [0], [0, 0, 1, 0], [], []>} : vector<256x8xbf16>, vector<768x8xbf16>, vector<256x768xf32> -> vector<256x768xf32>
    %c0_3 = arith.constant 0 : index
    %c0_4 = arith.constant 0 : index
    %4 = vector.load %arg4[%c0_3, %c0_4] : memref<256x1xf32, #tpu.memory_space<vmem>>, vector<256x1xf32>
    %5 = vector.broadcast %4 : vector<256x1xf32> to vector<256x768xf32>
    %6 = arith.addf %3, %5 : vector<256x768xf32>
    %7 = math.tanh %6 : vector<256x768xf32>
    %8 = arith.truncf %7 : vector<256x768xf32> to vector<256x768xbf16>
    %c0_5 = arith.constant 0 : index
    %c0_6 = arith.constant 0 : index
    %9 = vector.load %arg5[%c0_5, %c0_6] : memref<128x256xbf16, #tpu.memory_space<vmem>>, vector<128x256xbf16>
    %cst_7 = arith.constant dense<0.000000e+00> : vector<128x768xf32>
    %10 = tpu.matmul %9, %8, %cst_7 {dimension_numbers = #tpu.dot_dimension_numbers<[1], [0], [0], [1], [0, 0, 1, 1], [], []>} : vector<128x256xbf16>, vector<256x768xbf16>, vector<128x768xf32> -> vector<128x768xf32>
    %c0_8 = arith.constant 0 : index
    %c0_9 = arith.constant 0 : index
    %11 = vector.load %arg6[%c0_8, %c0_9] : memref<128x1xf32, #tpu.memory_space<vmem>>, vector<128x1xf32>
    %12 = vector.broadcast %11 : vector<128x1xf32> to vector<128x768xf32>
    %13 = arith.addf %10, %12 : vector<128x768xf32>
    %14 = math.tanh %13 : vector<128x768xf32>
    %15 = arith.truncf %14 : vector<128x768xf32> to vector<128x768xbf16>
    %c0_10 = arith.constant 0 : index
    %c0_11 = arith.constant 0 : index
    %16 = vector.load %arg7[%c0_10, %c0_11] : memref<8x128xbf16, #tpu.memory_space<vmem>>, vector<8x128xbf16>
    %cst_12 = arith.constant dense<0.000000e+00> : vector<8x768xf32>
    %17 = tpu.matmul %16, %15, %cst_12 {dimension_numbers = #tpu.dot_dimension_numbers<[1], [0], [0], [1], [0, 0, 1, 1], [], []>} : vector<8x128xbf16>, vector<128x768xbf16>, vector<8x768xf32> -> vector<8x768xf32>
    %c0_13 = arith.constant 0 : index
    %c0_14 = arith.constant 0 : index
    %18 = vector.load %arg8[%c0_13, %c0_14] : memref<8x1xf32, #tpu.memory_space<vmem>>, vector<8x1xf32>
    %19 = vector.broadcast %18 : vector<8x1xf32> to vector<8x768xf32>
    %20 = arith.addf %17, %19 : vector<8x768xf32>
    %21 = vector.extract_strided_slice %20 {offsets = [0, 0], sizes = [2, 768], strides = [1, 1]} : vector<8x768xf32> to vector<2x768xf32>
    %22 = math.tanh %21 : vector<2x768xf32>
    %23 = vector.extract_strided_slice %20 {offsets = [2, 0], sizes = [1, 768], strides = [1, 1]} : vector<8x768xf32> to vector<1x768xf32>
    %24 = vector.extract_strided_slice %20 {offsets = [3, 0], sizes = [1, 768], strides = [1, 1]} : vector<8x768xf32> to vector<1x768xf32>
    %c0_15 = arith.constant 0 : index
    %c0_16 = arith.constant 0 : index
    %25 = vector.load %arg2[%c0_15, %c0_16] : memref<2x768xf32, #tpu.memory_space<vmem>>, vector<2x768xf32>
    %26 = arith.subf %25, %22 : vector<2x768xf32>
    %27 = arith.mulf %26, %26 : vector<2x768xf32>
    %c0_17 = arith.constant 0 : index
    %c0_18 = arith.constant 0 : index
    %28 = vector.load %arg9[%c0_17, %c0_18] : memref<2x1xf32, #tpu.memory_space<vmem>>, vector<2x1xf32>
    %29 = vector.broadcast %28 : vector<2x1xf32> to vector<2x768xf32>
    %30 = arith.mulf %27, %29 : vector<2x768xf32>
    %cst_19 = arith.constant dense<0.000000e+00> : vector<768xf32>
    %31 = vector.multi_reduction <add>, %30, %cst_19 [0] : vector<2x768xf32> to vector<768xf32>
    %32 = vector.shape_cast %31 : vector<768xf32> to vector<1x768xf32>
    %cst_20 = arith.constant 5.000000e-01 : f32
    %33 = vector.broadcast %cst_20 : f32 to vector<1x768xf32>
    %34 = arith.mulf %33, %32 : vector<1x768xf32>
    %35 = arith.subf %24, %34 : vector<1x768xf32>
    %c0_21 = arith.constant 0 : index
    %c0_22 = arith.constant 0 : index
    %36 = vector.load %arg10[%c0_21, %c0_22] : memref<2x768xf32, #tpu.memory_space<vmem>>, vector<1x768xf32>
    tpu.vector_store %arg10[%c0_21, %c0_22], %35 {strides = array<i32>} : memref<2x768xf32, #tpu.memory_space<vmem>>, vector<1x768xf32>,
    %c1 = arith.constant 1 : index
    %c0_23 = arith.constant 0 : index
    %37 = vector.load %arg10[%c1, %c0_23] : memref<2x768xf32, #tpu.memory_space<vmem>>, vector<1x768xf32>
    tpu.vector_store %arg10[%c1, %c0_23], %23 {strides = array<i32>} : memref<2x768xf32, #tpu.memory_space<vmem>>, vector<1x768xf32>,
    return
  }
  func.func @transform_0(%arg0: i32) -> (i32, i32) {
    %c0_i32 = arith.constant 0 : i32
    %c0_i32_0 = arith.constant 0 : i32
    return %arg0, %c0_i32 : i32, i32
  }
  func.func @transform_1(%arg0: i32) -> (i32, i32) {
    %c0_i32 = arith.constant 0 : i32
    %c0_i32_0 = arith.constant 0 : i32
    return %c0_i32, %arg0 : i32, i32
  }
  func.func @transform_2(%arg0: i32) -> (i32, i32) {
    %c0_i32 = arith.constant 0 : i32
    %c0_i32_0 = arith.constant 0 : i32
    %c0_i32_1 = arith.constant 0 : i32
    return %c0_i32, %c0_i32_0 : i32, i32
  }
  func.func @transform_3(%arg0: i32) -> (i32, i32) {
    %c0_i32 = arith.constant 0 : i32
    %c0_i32_0 = arith.constant 0 : i32
    %c0_i32_1 = arith.constant 0 : i32
    return %c0_i32, %c0_i32_0 : i32, i32
  }
  func.func @transform_4(%arg0: i32) -> (i32, i32) {
    %c0_i32 = arith.constant 0 : i32
    %c0_i32_0 = arith.constant 0 : i32
    %c0_i32_1 = arith.constant 0 : i32
    return %c0_i32, %c0_i32_0 : i32, i32
  }
  func.func @transform_5(%arg0: i32) -> (i32, i32) {
    %c0_i32 = arith.constant 0 : i32
    %c0_i32_0 = arith.constant 0 : i32
    %c0_i32_1 = arith.constant 0 : i32
    return %c0_i32, %c0_i32_0 : i32, i32
  }
  func.func @transform_6(%arg0: i32) -> (i32, i32) {
    %c0_i32 = arith.constant 0 : i32
    %c0_i32_0 = arith.constant 0 : i32
    %c0_i32_1 = arith.constant 0 : i32
    return %c0_i32, %c0_i32_0 : i32, i32
  }
  func.func @transform_7(%arg0: i32) -> (i32, i32) {
    %c0_i32 = arith.constant 0 : i32
    %c0_i32_0 = arith.constant 0 : i32
    %c0_i32_1 = arith.constant 0 : i32
    return %c0_i32, %c0_i32_0 : i32, i32
  }
  func.func @transform_8(%arg0: i32) -> (i32, i32) {
    %c0_i32 = arith.constant 0 : i32
    %c0_i32_0 = arith.constant 0 : i32
    %c0_i32_1 = arith.constant 0 : i32
    return %c0_i32, %c0_i32_0 : i32, i32
  }
  func.func @transform_9(%arg0: i32) -> (i32, i32) {
    %c0_i32 = arith.constant 0 : i32
    %c0_i32_0 = arith.constant 0 : i32
    return %c0_i32, %arg0 : i32, i32
  }
}

</mosaic_0001>

<llo_original>
// kernel: tpu_custom_call.1
$region0: #{tpu_custom_call.1}
  #allocation0 [shape = 'u32[]', space=smem, size = 0x4, offset = 0x4, fixed_abs, tag = 'smem constant byte address 0x4 - core index']
  #allocation1 [shape = 'u32[144,128]{1,0:T(1,128)}', space=vmem, size = 0x12000, scoped, tag = 'internal scratch']
  %s0 = inlined_call_operand.vmem [shape: f32[2600,8], index: 0, kind: input, shape index: {}]
  %s1 = inlined_call_operand.vmem [shape: f32[2,2600], index: 1, kind: input, shape index: {}]
  %s2 = inlined_call_operand.vmem [shape: bf16[256,8], index: 2, kind: input, shape index: {}]
  %s3 = inlined_call_operand.vmem [shape: f32[256,1], index: 3, kind: input, shape index: {}]
  %s4 = inlined_call_operand.vmem [shape: bf16[128,256], index: 4, kind: input, shape index: {}]
  %s5 = inlined_call_operand.vmem [shape: f32[128,1], index: 5, kind: input, shape index: {}]
  %s6 = inlined_call_operand.vmem [shape: bf16[8,128], index: 6, kind: input, shape index: {}]
  %s7 = inlined_call_operand.vmem [shape: f32[8,1], index: 7, kind: input, shape index: {}]
  %s8 = inlined_call_operand.vmem [shape: f32[2,1], index: 8, kind: input, shape index: {}]
  %s9 = inlined_call_operand.hbm [shape: f32[2,2600], index: 9, kind: output, shape index: {}]
  %s10 = sld [smem:[#allocation0]]
  $region69: #{tpu_custom_call.1} parent=0
    _
  %s12 = ssub.s32 1, %s10
  %s13 = scalar_select 0, %s12, %s10
  $region1: #{tpu_custom_call.1} parent=0
    #allocation2 [shape = 'u8[12288]{0}', space=vmem, size = 0x3000, scoped, tag = 'output window, operand 0']
    #allocation3 [shape = 's32[2]{0}', space=sflag, size = 0x8, scoped, tag = 'scoped memory for tpu_custom_call.1']
    %14 = vsyncpa [#allocation3], 0
    %s15 = scalar_lea.sflag [#allocation3], 1
    %16 = vsyncpa %s15, 0
    loop: start=0, step=1, limit=6
    $region2: #{tpu_custom_call.1} parent=1 // loop_pre_header
      _
    $region3: #{tpu_custom_call.1} parent=1 // loop_header
      %s18 = sphi 0, %s22
      %p19 = scmp.ge.s32.totalorder %s18, 6
      %s28 = sphi 0, %s30
      %s31 = sphi 0, %s28
      %s32 = sphi 0, %s31
      %s48 = sphi 0, %s32
      %s54 = sphi 0, %s56
      %s57 = sphi 0, %s54
      %s58 = sphi 0, %s57
      %s74 = sphi 0, %s58
      %s78 = sphi 0, %s78
      %s80 = sphi 0, %s78
      %s81 = sphi 0, %s80
      %s95 = sphi 0, %s81
      %s99 = sphi 0, %s99
      %s101 = sphi 0, %s99
      %s102 = sphi 0, %s101
      %s116 = sphi 0, %s102
      %s120 = sphi 0, %s120
      %s122 = sphi 0, %s120
      %s123 = sphi 0, %s122
      %s137 = sphi 0, %s123
      %s141 = sphi 0, %s141
      %s143 = sphi 0, %s141
      %s144 = sphi 0, %s143
      %s158 = sphi 0, %s144
      %s162 = sphi 0, %s162
      %s164 = sphi 0, %s162
      %s165 = sphi 0, %s164
      %s179 = sphi 0, %s165
      %s183 = sphi 0, %s183
      %s185 = sphi 0, %s183
      %s186 = sphi 0, %s185
      %s200 = sphi 0, %s186
      %s204 = sphi 0, %s204
      %s206 = sphi 0, %s204
      %s207 = sphi 0, %s206
      %s221 = sphi 0, %s207
      %s227 = sphi 0, %s229
      %s230 = sphi 0, %s227
      %s231 = sphi 0, %s230
      %s247 = sphi 0, %s231
    $region4: #{tpu_custom_call.1} parent=1 // loop_header_branch
      %21 = sbr.rel (%p19) target = $region8
    $region5: #{tpu_custom_call.1} parent=1 // loop_body
      %s23 = ssub.s32 %s18, 1
      %s24 = ssub.s32 %s18, 2
      %s25 = sadd.s32 %s18, 1
      %s26 = ssub.s32 %s18, %s25
      %p27 = scmp.eq.s32.totalorder %s26, 0
      %s29 = sadd.s32 %s28, 1
      %s30 = scalar_select %p27, %s28, %s29
      %p33 = pneg %p27
      %p34 = scmp.eq.s32.totalorder %s18, 3
      %p35 = por %p33, %p34
      %p36 = scmp.ne.s32.totalorder %s28, %s31
      %p37 = scmp.eq.s32.totalorder %s18, 0
      %p38 = por %p36, %p37
      %p39 = scmp.ne.s32.totalorder %s28, %s31
      %p40 = scmp.eq.s32.totalorder %s23, 3
      %p41 = por %p39, %p40
      %p42 = scmp.ne.s32.totalorder %s31, %s32
      %p43 = scmp.eq.s32.totalorder %s23, 0
      %p44 = por %p42, %p43
      %p45 = scmp.ne.s32.totalorder %s31, %s32
      %p46 = scmp.eq.s32.totalorder %s24, 3
      %p47 = por %p45, %p46
      %p49 = scmp.ne.s32.totalorder %s32, %s48
      %p50 = scmp.eq.s32.totalorder %s24, 0
      %p51 = por %p49, %p50
      %s52 = ssub.s32 %s18, %s25
      %p53 = scmp.eq.s32.totalorder %s52, 0
      %s55 = sadd.s32 %s54, 1
      %s56 = scalar_select %p53, %s54, %s55
      %p59 = pneg %p53
      %p60 = scmp.eq.s32.totalorder %s18, 3
      %p61 = por %p59, %p60
      %p62 = scmp.ne.s32.totalorder %s54, %s57
      %p63 = scmp.eq.s32.totalorder %s18, 0
      %p64 = por %p62, %p63
      %p65 = scmp.ne.s32.totalorder %s54, %s57
      %p66 = scmp.eq.s32.totalorder %s23, 3
      %p67 = por %p65, %p66
      %p68 = scmp.ne.s32.totalorder %s57, %s58
      %p69 = scmp.eq.s32.totalorder %s23, 0
      %p70 = por %p68, %p69
      %p71 = scmp.ne.s32.totalorder %s57, %s58
      %p72 = scmp.eq.s32.totalorder %s24, 3
      %p73 = por %p71, %p72
      %p75 = scmp.ne.s32.totalorder %s58, %s74
      %p76 = scmp.eq.s32.totalorder %s24, 0
      %p77 = por %p75, %p76
      %s79 = sadd.s32 %s78, 1
      %p82 = scmp.eq.s32.totalorder %s18, 3
      %p83 = scmp.ne.s32.totalorder %s78, %s80
      %p84 = scmp.eq.s32.totalorder %s18, 0
      %p85 = por %p83, %p84
      %p86 = scmp.ne.s32.totalorder %s78, %s80
      %p87 = scmp.eq.s32.totalorder %s23, 3
      %p88 = por %p86, %p87
      %p89 = scmp.ne.s32.totalorder %s80, %s81
      %p90 = scmp.eq.s32.totalorder %s23, 0
      %p91 = por %p89, %p90
      %p92 = scmp.ne.s32.totalorder %s80, %s81
      %p93 = scmp.eq.s32.totalorder %s24, 3
      %p94 = por %p92, %p93
      %p96 = scmp.ne.s32.totalorder %s81, %s95
      %p97 = scmp.eq.s32.totalorder %s24, 0
      %p98 = por %p96, %p97
      %s100 = sadd.s32 %s99, 1
      %p103 = scmp.eq.s32.totalorder %s18, 3
      %p104 = scmp.ne.s32.totalorder %s99, %s101
      %p105 = scmp.eq.s32.totalorder %s18, 0
      %p106 = por %p104, %p105
      %p107 = scmp.ne.s32.totalorder %s99, %s101
      %p108 = scmp.eq.s32.totalorder %s23, 3
      %p109 = por %p107, %p108
      %p110 = scmp.ne.s32.totalorder %s101, %s102
      %p111 = scmp.eq.s32.totalorder %s23, 0
      %p112 = por %p110, %p111
      %p113 = scmp.ne.s32.totalorder %s101, %s102
      %p114 = scmp.eq.s32.totalorder %s24, 3
      %p115 = por %p113, %p114
      %p117 = scmp.ne.s32.totalorder %s102, %s116
      %p118 = scmp.eq.s32.totalorder %s24, 0
      %p119 = por %p117, %p118
      %s121 = sadd.s32 %s120, 1
      %p124 = scmp.eq.s32.totalorder %s18, 3
      %p125 = scmp.ne.s32.totalorder %s120, %s122
      %p126 = scmp.eq.s32.totalorder %s18, 0
      %p127 = por %p125, %p126
      %p128 = scmp.ne.s32.totalorder %s120, %s122
      %p129 = scmp.eq.s32.totalorder %s23, 3
      %p130 = por %p128, %p129
      %p131 = scmp.ne.s32.totalorder %s122, %s123
      %p132 = scmp.eq.s32.totalorder %s23, 0
      %p133 = por %p131, %p132
      %p134 = scmp.ne.s32.totalorder %s122, %s123
      %p135 = scmp.eq.s32.totalorder %s24, 3
      %p136 = por %p134, %p135
      %p138 = scmp.ne.s32.totalorder %s123, %s137
      %p139 = scmp.eq.s32.totalorder %s24, 0
      %p140 = por %p138, %p139
      %s142 = sadd.s32 %s141, 1
      %p145 = scmp.eq.s32.totalorder %s18, 3
      %p146 = scmp.ne.s32.totalorder %s141, %s143
      %p147 = scmp.eq.s32.totalorder %s18, 0
      %p148 = por %p146, %p147
      %p149 = scmp.ne.s32.totalorder %s141, %s143
      %p150 = scmp.eq.s32.totalorder %s23, 3
      %p151 = por %p149, %p150
      %p152 = scmp.ne.s32.totalorder %s143, %s144
      %p153 = scmp.eq.s32.totalorder %s23, 0
      %p154 = por %p152, %p153
      %p155 = scmp.ne.s32.totalorder %s143, %s144
      %p156 = scmp.eq.s32.totalorder %s24, 3
      %p157 = por %p155, %p156
      %p159 = scmp.ne.s32.totalorder %s144, %s158
      %p160 = scmp.eq.s32.totalorder %s24, 0
      %p161 = por %p159, %p160
      %s163 = sadd.s32 %s162, 1
      %p166 = scmp.eq.s32.totalorder %s18, 3
      %p167 = scmp.ne.s32.totalorder %s162, %s164
      %p168 = scmp.eq.s32.totalorder %s18, 0
      %p169 = por %p167, %p168
      %p170 = scmp.ne.s32.totalorder %s162, %s164
      %p171 = scmp.eq.s32.totalorder %s23, 3
      %p172 = por %p170, %p171
      %p173 = scmp.ne.s32.totalorder %s164, %s165
      %p174 = scmp.eq.s32.totalorder %s23, 0
      %p175 = por %p173, %p174
      %p176 = scmp.ne.s32.totalorder %s164, %s165
      %p177 = scmp.eq.s32.totalorder %s24, 3
      %p178 = por %p176, %p177
      %p180 = scmp.ne.s32.totalorder %s165, %s179
      %p181 = scmp.eq.s32.totalorder %s24, 0
      %p182 = por %p180, %p181
      %s184 = sadd.s32 %s183, 1
      %p187 = scmp.eq.s32.totalorder %s18, 3
      %p188 = scmp.ne.s32.totalorder %s183, %s185
      %p189 = scmp.eq.s32.totalorder %s18, 0
      %p190 = por %p188, %p189
      %p191 = scmp.ne.s32.totalorder %s183, %s185
      %p192 = scmp.eq.s32.totalorder %s23, 3
      %p193 = por %p191, %p192
      %p194 = scmp.ne.s32.totalorder %s185, %s186
      %p195 = scmp.eq.s32.totalorder %s23, 0
      %p196 = por %p194, %p195
      %p197 = scmp.ne.s32.totalorder %s185, %s186
      %p198 = scmp.eq.s32.totalorder %s24, 3
      %p199 = por %p197, %p198
      %p201 = scmp.ne.s32.totalorder %s186, %s200
      %p202 = scmp.eq.s32.totalorder %s24, 0
      %p203 = por %p201, %p202
      %s205 = sadd.s32 %s204, 1
      %p208 = scmp.eq.s32.totalorder %s18, 3
      %p209 = scmp.ne.s32.totalorder %s204, %s206
      %p210 = scmp.eq.s32.totalorder %s18, 0
      %p211 = por %p209, %p210
      %p212 = scmp.ne.s32.totalorder %s204, %s206
      %p213 = scmp.eq.s32.totalorder %s23, 3
      %p214 = por %p212, %p213
      %p215 = scmp.ne.s32.totalorder %s206, %s207
      %p216 = scmp.eq.s32.totalorder %s23, 0
      %p217 = por %p215, %p216
      %p218 = scmp.ne.s32.totalorder %s206, %s207
      %p219 = scmp.eq.s32.totalorder %s24, 3
      %p220 = por %p218, %p219
      %p222 = scmp.ne.s32.totalorder %s207, %s221
      %p223 = scmp.eq.s32.totalorder %s24, 0
      %p224 = por %p222, %p223
      %s225 = ssub.s32 %s18, %s25
      %p226 = scmp.eq.s32.totalorder %s225, 0
      %s228 = sadd.s32 %s227, 1
      %s229 = scalar_select %p226, %s227, %s228
      %p232 = pneg %p226
      %p233 = scmp.eq.s32.totalorder %s18, 3
      %p234 = por %p232, %p233
      %p235 = scmp.ne.s32.totalorder %s227, %s230
      %p236 = scmp.eq.s32.totalorder %s18, 0
      %p237 = por %p235, %p236
      %p238 = scmp.ne.s32.totalorder %s227, %s230
      %p239 = scmp.eq.s32.totalorder %s23, 3
      %p240 = por %p238, %p239
      %p241 = scmp.ne.s32.totalorder %s230, %s231
      %p242 = scmp.eq.s32.totalorder %s23, 0
      %p243 = por %p241, %p242
      %p244 = scmp.ne.s32.totalorder %s230, %s231
      %p245 = scmp.eq.s32.totalorder %s24, 3
      %p246 = por %p244, %p245
      %p248 = scmp.ne.s32.totalorder %s231, %s247
      %p249 = scmp.eq.s32.totalorder %s24, 0
      %p250 = por %p248, %p249
      %p251 = scmp.le.s32.totalorder 1, %s18
      %p252 = scmp.lt.s32.totalorder %s18, 5
      %p253 = pnand %p251, %p252
      %p254 = pneg %p253
      // Predicated region
      $region9: #{tpu_custom_call.1} parent=5 // pred_check
        _
      $region10: #{tpu_custom_call.1} parent=5 // pred_check_branch
        %256 = sbr.rel (%p253) target = $region12
      $region11: #{tpu_custom_call.1} parent=5 // pred_region
        %s257 = ssub.s32 %s18, 1
        // Predicated region
        $region13: #{tpu_custom_call.1} parent=11 // pred_check
          %p258 = pneg %p91
        $region14: #{tpu_custom_call.1} parent=11 // pred_check_branch
          %260 = sbr.rel (%p258) target = $region16
        $region15: #{tpu_custom_call.1} parent=11 // pred_region
          _
        $region16: #{tpu_custom_call.1} parent=11 // pred_fallthru
          _
        // Predicated region
        $region17: #{tpu_custom_call.1} parent=11 // pred_check
          %p261 = pneg %p112
        $region18: #{tpu_custom_call.1} parent=11 // pred_check_branch
          %263 = sbr.rel (%p261) target = $region20
        $region19: #{tpu_custom_call.1} parent=11 // pred_region
          _
        $region20: #{tpu_custom_call.1} parent=11 // pred_fallthru
          _
        // Predicated region
        $region21: #{tpu_custom_call.1} parent=11 // pred_check
          %p264 = pneg %p133
        $region22: #{tpu_custom_call.1} parent=11 // pred_check_branch
          %266 = sbr.rel (%p264) target = $region24
        $region23: #{tpu_custom_call.1} parent=11 // pred_region
          _
        $region24: #{tpu_custom_call.1} parent=11 // pred_fallthru
          _
        // Predicated region
        $region25: #{tpu_custom_call.1} parent=11 // pred_check
          %p267 = pneg %p154
        $region26: #{tpu_custom_call.1} parent=11 // pred_check_branch
          %269 = sbr.rel (%p267) target = $region28
        $region27: #{tpu_custom_call.1} parent=11 // pred_region
          _
        $region28: #{tpu_custom_call.1} parent=11 // pred_fallthru
          _
        // Predicated region
        $region29: #{tpu_custom_call.1} parent=11 // pred_check
          %p270 = pneg %p175
        $region30: #{tpu_custom_call.1} parent=11 // pred_check_branch
          %272 = sbr.rel (%p270) target = $region32
        $region31: #{tpu_custom_call.1} parent=11 // pred_region
          _
        $region32: #{tpu_custom_call.1} parent=11 // pred_fallthru
          _
        // Predicated region
        $region33: #{tpu_custom_call.1} parent=11 // pred_check
          %p273 = pneg %p196
        $region34: #{tpu_custom_call.1} parent=11 // pred_check_branch
          %275 = sbr.rel (%p273) target = $region36
        $region35: #{tpu_custom_call.1} parent=11 // pred_region
          _
        $region36: #{tpu_custom_call.1} parent=11 // pred_fallthru
          _
        // Predicated region
        $region37: #{tpu_custom_call.1} parent=11 // pred_check
          %p276 = pneg %p217
        $region38: #{tpu_custom_call.1} parent=11 // pred_check_branch
          %278 = sbr.rel (%p276) target = $region40
        $region39: #{tpu_custom_call.1} parent=11 // pred_region
          _
        $region40: #{tpu_custom_call.1} parent=11 // pred_fallthru
          _
      $region12: #{tpu_custom_call.1} parent=5 // pred_fallthru
        _
      %p279 = scmp.lt.s32.totalorder %s18, 4
      // Predicated region
      $region41: #{tpu_custom_call.1} parent=5 // pred_check
        %p280 = pneg %p279
      $region42: #{tpu_custom_call.1} parent=5 // pred_check_branch
        %282 = sbr.rel (%p280) target = $region44
      $region43: #{tpu_custom_call.1} parent=5 // pred_region
        // Predicated region
        $region45: #{tpu_custom_call.1} parent=43 // pred_check
          %p283 = pneg %p38
        $region46: #{tpu_custom_call.1} parent=43 // pred_check_branch
          %285 = sbr.rel (%p283) target = $region48
        $region47: #{tpu_custom_call.1} parent=43 // pred_region
          %s286 = smul.u32 96, %s18
          %s287 = ssub.s32 325, %s286
          %p288 = scmp.lt.s32.totalorder %s287, 96
          %s289 = scalar_select %p288, %s287, 96
          %s290 = smul.u32 128, %s289
          %p291 = scmp.lt.s32.totalorder %s286, 324
          %s292 = scalar_select %p291, %s286, 324
          %s293 = smul.addr %s292, 8
          %s294 = scalar_lea.vmem %s0, %s293
          %s295 = smul.u32 96, %s18
          %s296 = ssub.s32 325, %s295
          %p297 = scmp.lt.s32.totalorder %s296, 96
          %s298 = scalar_select %p297, %s296, 96
          %s299 = smul.u32 128, %s298
        $region48: #{tpu_custom_call.1} parent=43 // pred_fallthru
          _
        // Predicated region
        $region49: #{tpu_custom_call.1} parent=43 // pred_check
          %p300 = pneg %p64
        $region50: #{tpu_custom_call.1} parent=43 // pred_check_branch
          %302 = sbr.rel (%p300) target = $region52
        $region51: #{tpu_custom_call.1} parent=43 // pred_region
          %s303 = smul.u32 6, %s18
          %s304 = ssub.s32 21, %s303
          %p305 = scmp.lt.s32.totalorder %s304, 6
          %s306 = scalar_select %p305, %s304, 6
          %s307 = smul.u32 32, %s306
          %p308 = scmp.lt.s32.totalorder %s303, 20
          %s309 = scalar_select %p308, %s303, 20
          %s310 = smul.addr %s309, 2
          %s311 = scalar_lea.vmem %s1, %s310
          %s312 = smul.u32 6, %s18
          %s313 = ssub.s32 21, %s312
          %p314 = scmp.lt.s32.totalorder %s313, 6
          %s315 = scalar_select %p314, %s313, 6
          %s316 = smul.u32 32, %s315
        $region52: #{tpu_custom_call.1} parent=43 // pred_fallthru
          _
      $region44: #{tpu_custom_call.1} parent=5 // pred_fallthru
        _
      %p317 = scmp.le.s32.totalorder 1, %s18
      %p318 = scmp.lt.s32.totalorder %s18, 5
      %p319 = pnand %p317, %p318
      %p320 = pneg %p319
      // Predicated region
      $region53: #{tpu_custom_call.1} parent=5 // pred_check
        _
      $region54: #{tpu_custom_call.1} parent=5 // pred_check_branch
        %322 = sbr.rel (%p319) target = $region56
      $region55: #{tpu_custom_call.1} parent=5 // pred_region
        %s323 = ssub.s32 %s18, 1
        %s324 = smul.u32 96, %s23
        %s325 = ssub.s32 325, %s324
        %p326 = scmp.lt.s32.totalorder %s325, 96
        %s327 = scalar_select %p326, %s325, 96
        %s328 = smul.u32 128, %s327
        %p329 = scmp.lt.s32.totalorder %s324, 324
        %s330 = scalar_select %p329, %s324, 324
        %s331 = smul.addr %s330, 8
        %s332 = scalar_lea.vmem %s0, %s331
        %p333 = pneg %p44
        %p334 = pneg %p41
        %s335 = smul.u32 6, %s23
        %s336 = ssub.s32 21, %s335
        %p337 = scmp.lt.s32.totalorder %s336, 6
        %s338 = scalar_select %p337, %s336, 6
        %s339 = smul.u32 32, %s338
        %p340 = scmp.lt.s32.totalorder %s335, 20
        %s341 = scalar_select %p340, %s335, 20
        %s342 = smul.addr %s341, 2
        %s343 = scalar_lea.vmem %s1, %s342
        %p344 = pneg %p70
        %p345 = pneg %p67
        %p346 = pneg %p91
        %p347 = pneg %p88
        %p348 = pneg %p112
        %p349 = pneg %p109
        %p350 = pneg %p133
        %p351 = pneg %p130
        %p352 = pneg %p154
        %p353 = pneg %p151
        %p354 = pneg %p175
        %p355 = pneg %p172
        %p356 = pneg %p196
        %p357 = pneg %p193
        %p358 = pneg %p217
        %p359 = pneg %p214
        %p360 = pneg %p243
        %p361 = pneg %p240
        %s362 = sand.u32 %s230, 1
        %s363 = scalar_lea.sflag [#allocation3], %s362
        %s364 = sand.u32 %s230, 1
        %s365 = smul.addr %s364, 12
        %s366 = scalar_lea.vmem [#allocation2], %s365
        %s367 = smul.u32 96, %s23
        %s368 = ssub.s32 325, %s367
        %p369 = scmp.lt.s32.totalorder %s368, 96
        %s370 = scalar_select %p369, %s368, 96
        %s371 = smul.u32 128, %s370
        %p372 = scmp.lt.s32.totalorder %s367, 324
        %s373 = scalar_select %p372, %s367, 324
        %s374 = smul.addr %s373, 8
        %s375 = scalar_lea.vmem %s0, %s374
        %s376 = smul.u32 96, %s23
        %s377 = ssub.s32 325, %s376
        %p378 = scmp.lt.s32.totalorder %s377, 96
        %s379 = scalar_select %p378, %s377, 96
        %s380 = smul.u32 128, %s379
        %s381 = smul.u32 6, %s23
        %s382 = ssub.s32 21, %s381
        %p383 = scmp.lt.s32.totalorder %s382, 6
        %s384 = scalar_select %p383, %s382, 6
        %s385 = smul.u32 32, %s384
        %p386 = scmp.lt.s32.totalorder %s381, 20
        %s387 = scalar_select %p386, %s381, 20
        %s388 = smul.addr %s387, 2
        %s389 = scalar_lea.vmem %s1, %s388
        %s390 = smul.u32 6, %s23
        %s391 = ssub.s32 21, %s390
        %p392 = scmp.lt.s32.totalorder %s391, 6
        %s393 = scalar_select %p392, %s391, 6
        %s394 = smul.u32 32, %s393
        %s395 = smul.u32 6, %s23
        %s396 = ssub.s32 21, %s395
        %p397 = scmp.lt.s32.totalorder %s396, 6
        %s398 = scalar_select %p397, %s396, 6
        %s399 = smul.u32 32, %s398
        %v401 = vld [vmem:[%s2] sm:$0xf]
        %v402 = vld [vmem:[%s2 + $0x4] sm:$0xf]
        %v403 = vld [vmem:[%s2 + $0x8] sm:$0xf]
        %v404 = vld [vmem:[%s2 + $0xc] sm:$0xf]
        %v405 = vld [vmem:[%s2 + $0x10] sm:$0xf]
        %v406 = vld [vmem:[%s2 + $0x14] sm:$0xf]
        %v407 = vld [vmem:[%s2 + $0x18] sm:$0xf]
        %v408 = vld [vmem:[%s2 + $0x1c] sm:$0xf]
        %v409 = vld [vmem:[%s2 + $0x20] sm:$0xf]
        %v410 = vld [vmem:[%s2 + $0x24] sm:$0xf]
        %v411 = vld [vmem:[%s2 + $0x28] sm:$0xf]
        %v412 = vld [vmem:[%s2 + $0x2c] sm:$0xf]
        %v413 = vld [vmem:[%s2 + $0x30] sm:$0xf]
        %v414 = vld [vmem:[%s2 + $0x34] sm:$0xf]
        %v415 = vld [vmem:[%s2 + $0x38] sm:$0xf]
        %v416 = vld [vmem:[%s2 + $0x3c] sm:$0xf]
        %v417 = vld [vmem:[%s2 + $0x40] sm:$0xf]
        %v418 = vld [vmem:[%s2 + $0x44] sm:$0xf]
        %v419 = vld [vmem:[%s2 + $0x48] sm:$0xf]
        %v420 = vld [vmem:[%s2 + $0x4c] sm:$0xf]
        %v421 = vld [vmem:[%s2 + $0x50] sm:$0xf]
        %v422 = vld [vmem:[%s2 + $0x54] sm:$0xf]
        %v423 = vld [vmem:[%s2 + $0x58] sm:$0xf]
        %v424 = vld [vmem:[%s2 + $0x5c] sm:$0xf]
        %v425 = vld [vmem:[%s2 + $0x60] sm:$0xf]
        %v426 = vld [vmem:[%s2 + $0x64] sm:$0xf]
        %v427 = vld [vmem:[%s2 + $0x68] sm:$0xf]
        %v428 = vld [vmem:[%s2 + $0x6c] sm:$0xf]
        %v429 = vld [vmem:[%s2 + $0x70] sm:$0xf]
        %v430 = vld [vmem:[%s2 + $0x74] sm:$0xf]
        %v431 = vld [vmem:[%s2 + $0x78] sm:$0xf]
        %v432 = vld [vmem:[%s2 + $0x7c] sm:$0xf]
        %v433 = vld [vmem:[%s375] sm:$0xff]
        %v434 = vld [vmem:[%s375 + $0x8] sm:$0xff]
        %v435 = vld [vmem:[%s375 + $0x10] sm:$0xff]
        %v436 = vld [vmem:[%s375 + $0x18] sm:$0xff]
        %v437 = vld [vmem:[%s375 + $0x20] sm:$0xff]
        %v438 = vld [vmem:[%s375 + $0x28] sm:$0xff]
        %v439 = vld [vmem:[%s375 + $0x30] sm:$0xff]
        %v440 = vld [vmem:[%s375 + $0x38] sm:$0xff]
        %v441 = vld [vmem:[%s375 + $0x40] sm:$0xff]
        %v442 = vld [vmem:[%s375 + $0x48] sm:$0xff]
        %v443 = vld [vmem:[%s375 + $0x50] sm:$0xff]
        %v444 = vld [vmem:[%s375 + $0x58] sm:$0xff]
        %v445 = vld [vmem:[%s375 + $0x60] sm:$0xff]
        %v446 = vld [vmem:[%s375 + $0x68] sm:$0xff]
        %v447 = vld [vmem:[%s375 + $0x70] sm:$0xff]
        %v448 = vld [vmem:[%s375 + $0x78] sm:$0xff]
        %v449 = vld [vmem:[%s375 + $0x80] sm:$0xff]
        %v450 = vld [vmem:[%s375 + $0x88] sm:$0xff]
        %v451 = vld [vmem:[%s375 + $0x90] sm:$0xff]
        %v452 = vld [vmem:[%s375 + $0x98] sm:$0xff]
        %v453 = vld [vmem:[%s375 + $0xa0] sm:$0xff]
        %v454 = vld [vmem:[%s375 + $0xa8] sm:$0xff]
        %v455 = vld [vmem:[%s375 + $0xb0] sm:$0xff]
        %v456 = vld [vmem:[%s375 + $0xb8] sm:$0xff]
        %v457 = vld [vmem:[%s375 + $0xc0] sm:$0xff]
        %v458 = vld [vmem:[%s375 + $0xc8] sm:$0xff]
        %v459 = vld [vmem:[%s375 + $0xd0] sm:$0xff]
        %v460 = vld [vmem:[%s375 + $0xd8] sm:$0xff]
        %v461 = vld [vmem:[%s375 + $0xe0] sm:$0xff]
        %v462 = vld [vmem:[%s375 + $0xe8] sm:$0xff]
        %v463 = vld [vmem:[%s375 + $0xf0] sm:$0xff]
        %v464 = vld [vmem:[%s375 + $0xf8] sm:$0xff]
        %v465 = vld [vmem:[%s375 + $0x100] sm:$0xff]
        %v466 = vld [vmem:[%s375 + $0x108] sm:$0xff]
        %v467 = vld [vmem:[%s375 + $0x110] sm:$0xff]
        %v468 = vld [vmem:[%s375 + $0x118] sm:$0xff]
        %v469 = vld [vmem:[%s375 + $0x120] sm:$0xff]
        %v470 = vld [vmem:[%s375 + $0x128] sm:$0xff]
        %v471 = vld [vmem:[%s375 + $0x130] sm:$0xff]
        %v472 = vld [vmem:[%s375 + $0x138] sm:$0xff]
        %v473 = vld [vmem:[%s375 + $0x140] sm:$0xff]
        %v474 = vld [vmem:[%s375 + $0x148] sm:$0xff]
        %v475 = vld [vmem:[%s375 + $0x150] sm:$0xff]
        %v476 = vld [vmem:[%s375 + $0x158] sm:$0xff]
        %v477 = vld [vmem:[%s375 + $0x160] sm:$0xff]
        %v478 = vld [vmem:[%s375 + $0x168] sm:$0xff]
        %v479 = vld [vmem:[%s375 + $0x170] sm:$0xff]
        %v480 = vld [vmem:[%s375 + $0x178] sm:$0xff]
        %v481 = vld [vmem:[%s375 + $0x180] sm:$0xff]
        %v482 = vld [vmem:[%s375 + $0x188] sm:$0xff]
        %v483 = vld [vmem:[%s375 + $0x190] sm:$0xff]
        %v484 = vld [vmem:[%s375 + $0x198] sm:$0xff]
        %v485 = vld [vmem:[%s375 + $0x1a0] sm:$0xff]
        %v486 = vld [vmem:[%s375 + $0x1a8] sm:$0xff]
        %v487 = vld [vmem:[%s375 + $0x1b0] sm:$0xff]
        %v488 = vld [vmem:[%s375 + $0x1b8] sm:$0xff]
        %v489 = vld [vmem:[%s375 + $0x1c0] sm:$0xff]
        %v490 = vld [vmem:[%s375 + $0x1c8] sm:$0xff]
        %v491 = vld [vmem:[%s375 + $0x1d0] sm:$0xff]
        %v492 = vld [vmem:[%s375 + $0x1d8] sm:$0xff]
        %v493 = vld [vmem:[%s375 + $0x1e0] sm:$0xff]
        %v494 = vld [vmem:[%s375 + $0x1e8] sm:$0xff]
        %v495 = vld [vmem:[%s375 + $0x1f0] sm:$0xff]
        %v496 = vld [vmem:[%s375 + $0x1f8] sm:$0xff]
        %v497 = vld [vmem:[%s375 + $0x200] sm:$0xff]
        %v498 = vld [vmem:[%s375 + $0x208] sm:$0xff]
        %v499 = vld [vmem:[%s375 + $0x210] sm:$0xff]
        %v500 = vld [vmem:[%s375 + $0x218] sm:$0xff]
        %v501 = vld [vmem:[%s375 + $0x220] sm:$0xff]
        %v502 = vld [vmem:[%s375 + $0x228] sm:$0xff]
        %v503 = vld [vmem:[%s375 + $0x230] sm:$0xff]
        %v504 = vld [vmem:[%s375 + $0x238] sm:$0xff]
        %v505 = vld [vmem:[%s375 + $0x240] sm:$0xff]
        %v506 = vld [vmem:[%s375 + $0x248] sm:$0xff]
        %v507 = vld [vmem:[%s375 + $0x250] sm:$0xff]
        %v508 = vld [vmem:[%s375 + $0x258] sm:$0xff]
        %v509 = vld [vmem:[%s375 + $0x260] sm:$0xff]
        %v510 = vld [vmem:[%s375 + $0x268] sm:$0xff]
        %v511 = vld [vmem:[%s375 + $0x270] sm:$0xff]
        %v512 = vld [vmem:[%s375 + $0x278] sm:$0xff]
        %v513 = vld [vmem:[%s375 + $0x280] sm:$0xff]
        %v514 = vld [vmem:[%s375 + $0x288] sm:$0xff]
        %v515 = vld [vmem:[%s375 + $0x290] sm:$0xff]
        %v516 = vld [vmem:[%s375 + $0x298] sm:$0xff]
        %v517 = vld [vmem:[%s375 + $0x2a0] sm:$0xff]
        %v518 = vld [vmem:[%s375 + $0x2a8] sm:$0xff]
        %v519 = vld [vmem:[%s375 + $0x2b0] sm:$0xff]
        %v520 = vld [vmem:[%s375 + $0x2b8] sm:$0xff]
        %v521 = vld [vmem:[%s375 + $0x2c0] sm:$0xff]
        %v522 = vld [vmem:[%s375 + $0x2c8] sm:$0xff]
        %v523 = vld [vmem:[%s375 + $0x2d0] sm:$0xff]
        %v524 = vld [vmem:[%s375 + $0x2d8] sm:$0xff]
        %v525 = vld [vmem:[%s375 + $0x2e0] sm:$0xff]
        %v526 = vld [vmem:[%s375 + $0x2e8] sm:$0xff]
        %v527 = vld [vmem:[%s375 + $0x2f0] sm:$0xff]
        %v528 = vld [vmem:[%s375 + $0x2f8] sm:$0xff]
        %v529 = vpack.c.bf16 %v434, %v433
        %v530 = vpack.c.bf16 %v436, %v435
        %v531 = vpack.c.bf16 %v438, %v437
        %v532 = vpack.c.bf16 %v440, %v439
        %v533 = vpack.c.bf16 %v442, %v441
        %v534 = vpack.c.bf16 %v444, %v443
        %v535 = vpack.c.bf16 %v446, %v445
        %v536 = vpack.c.bf16 %v448, %v447
        %v537 = vpack.c.bf16 %v450, %v449
        %v538 = vpack.c.bf16 %v452, %v451
        %v539 = vpack.c.bf16 %v454, %v453
        %v540 = vpack.c.bf16 %v456, %v455
        %v541 = vpack.c.bf16 %v458, %v457
        %v542 = vpack.c.bf16 %v460, %v459
        %v543 = vpack.c.bf16 %v462, %v461
        %v544 = vpack.c.bf16 %v464, %v463
        %v545 = vpack.c.bf16 %v466, %v465
        %v546 = vpack.c.bf16 %v468, %v467
        %v547 = vpack.c.bf16 %v470, %v469
        %v548 = vpack.c.bf16 %v472, %v471
        %v549 = vpack.c.bf16 %v474, %v473
        %v550 = vpack.c.bf16 %v476, %v475
        %v551 = vpack.c.bf16 %v478, %v477
        %v552 = vpack.c.bf16 %v480, %v479
        %v553 = vpack.c.bf16 %v482, %v481
        %v554 = vpack.c.bf16 %v484, %v483
        %v555 = vpack.c.bf16 %v486, %v485
        %v556 = vpack.c.bf16 %v488, %v487
        %v557 = vpack.c.bf16 %v490, %v489
        %v558 = vpack.c.bf16 %v492, %v491
        %v559 = vpack.c.bf16 %v494, %v493
        %v560 = vpack.c.bf16 %v496, %v495
        %v561 = vpack.c.bf16 %v498, %v497
        %v562 = vpack.c.bf16 %v500, %v499
        %v563 = vpack.c.bf16 %v502, %v501
        %v564 = vpack.c.bf16 %v504, %v503
        %v565 = vpack.c.bf16 %v506, %v505
        %v566 = vpack.c.bf16 %v508, %v507
        %v567 = vpack.c.bf16 %v510, %v509
        %v568 = vpack.c.bf16 %v512, %v511
        %v569 = vpack.c.bf16 %v514, %v513
        %v570 = vpack.c.bf16 %v516, %v515
        %v571 = vpack.c.bf16 %v518, %v517
        %v572 = vpack.c.bf16 %v520, %v519
        %v573 = vpack.c.bf16 %v522, %v521
        %v574 = vpack.c.bf16 %v524, %v523
        %v575 = vpack.c.bf16 %v526, %v525
        %v576 = vpack.c.bf16 %v528, %v527
        %v577 = vld [vmem:[%s3] sm:$0xff]
        %v578 = vld [vmem:[%s3 + $0x8] sm:$0xff]
        %v579 = vld [vmem:[%s3 + $0x10] sm:$0xff]
        %v580 = vld [vmem:[%s3 + $0x18] sm:$0xff]
        %v581 = vld [vmem:[%s3 + $0x20] sm:$0xff]
        %v582 = vld [vmem:[%s3 + $0x28] sm:$0xff]
        %v583 = vld [vmem:[%s3 + $0x30] sm:$0xff]
        %v584 = vld [vmem:[%s3 + $0x38] sm:$0xff]
        %v585 = vld [vmem:[%s3 + $0x40] sm:$0xff]
        %v586 = vld [vmem:[%s3 + $0x48] sm:$0xff]
        %v587 = vld [vmem:[%s3 + $0x50] sm:$0xff]
        %v588 = vld [vmem:[%s3 + $0x58] sm:$0xff]
        %v589 = vld [vmem:[%s3 + $0x60] sm:$0xff]
        %v590 = vld [vmem:[%s3 + $0x68] sm:$0xff]
        %v591 = vld [vmem:[%s3 + $0x70] sm:$0xff]
        %v592 = vld [vmem:[%s3 + $0x78] sm:$0xff]
        %v593 = vld [vmem:[%s3 + $0x80] sm:$0xff]
        %v594 = vld [vmem:[%s3 + $0x88] sm:$0xff]
        %v595 = vld [vmem:[%s3 + $0x90] sm:$0xff]
        %v596 = vld [vmem:[%s3 + $0x98] sm:$0xff]
        %v597 = vld [vmem:[%s3 + $0xa0] sm:$0xff]
        %v598 = vld [vmem:[%s3 + $0xa8] sm:$0xff]
        %v599 = vld [vmem:[%s3 + $0xb0] sm:$0xff]
        %v600 = vld [vmem:[%s3 + $0xb8] sm:$0xff]
        %v601 = vld [vmem:[%s3 + $0xc0] sm:$0xff]
        %v602 = vld [vmem:[%s3 + $0xc8] sm:$0xff]
        %v603 = vld [vmem:[%s3 + $0xd0] sm:$0xff]
        %v604 = vld [vmem:[%s3 + $0xd8] sm:$0xff]
        %v605 = vld [vmem:[%s3 + $0xe0] sm:$0xff]
        %v606 = vld [vmem:[%s3 + $0xe8] sm:$0xff]
        %v607 = vld [vmem:[%s3 + $0xf0] sm:$0xff]
        %v608 = vld [vmem:[%s3 + $0xf8] sm:$0xff]
        %610 = vset.pattern.permute.xlu0 0
        %611 = vperm.xlu0 %610, %v577
        %v612 = vpop.permute.xlu0 %611
        %615 = vset.pattern.permute.xlu0 0
        %616 = vperm.xlu0 %615, %v578
        %v617 = vpop.permute.xlu0 %616
        %620 = vset.pattern.permute.xlu0 0
        %621 = vperm.xlu0 %620, %v579
        %v622 = vpop.permute.xlu0 %621
        %625 = vset.pattern.permute.xlu0 0
        %626 = vperm.xlu0 %625, %v580
        %v627 = vpop.permute.xlu0 %626
        %630 = vset.pattern.permute.xlu0 0
        %631 = vperm.xlu0 %630, %v581
        %v632 = vpop.permute.xlu0 %631
        %635 = vset.pattern.permute.xlu0 0
        %636 = vperm.xlu0 %635, %v582
        %v637 = vpop.permute.xlu0 %636
        %640 = vset.pattern.permute.xlu0 0
        %641 = vperm.xlu0 %640, %v583
        %v642 = vpop.permute.xlu0 %641
        %645 = vset.pattern.permute.xlu0 0
        %646 = vperm.xlu0 %645, %v584
        %v647 = vpop.permute.xlu0 %646
        %650 = vset.pattern.permute.xlu0 0
        %651 = vperm.xlu0 %650, %v585
        %v652 = vpop.permute.xlu0 %651
        %655 = vset.pattern.permute.xlu0 0
        %656 = vperm.xlu0 %655, %v586
        %v657 = vpop.permute.xlu0 %656
        %660 = vset.pattern.permute.xlu0 0
        %661 = vperm.xlu0 %660, %v587
        %v662 = vpop.permute.xlu0 %661
        %665 = vset.pattern.permute.xlu0 0
        %666 = vperm.xlu0 %665, %v588
        %v667 = vpop.permute.xlu0 %666
        %670 = vset.pattern.permute.xlu0 0
        %671 = vperm.xlu0 %670, %v589
        %v672 = vpop.permute.xlu0 %671
        %675 = vset.pattern.permute.xlu0 0
        %676 = vperm.xlu0 %675, %v590
        %v677 = vpop.permute.xlu0 %676
        %680 = vset.pattern.permute.xlu0 0
        %681 = vperm.xlu0 %680, %v591
        %v682 = vpop.permute.xlu0 %681
        %685 = vset.pattern.permute.xlu0 0
        %686 = vperm.xlu0 %685, %v592
        %v687 = vpop.permute.xlu0 %686
        %690 = vset.pattern.permute.xlu0 0
        %691 = vperm.xlu0 %690, %v593
        %v692 = vpop.permute.xlu0 %691
        %695 = vset.pattern.permute.xlu0 0
        %696 = vperm.xlu0 %695, %v594
        %v697 = vpop.permute.xlu0 %696
        %700 = vset.pattern.permute.xlu0 0
        %701 = vperm.xlu0 %700, %v595
        %v702 = vpop.permute.xlu0 %701
        %705 = vset.pattern.permute.xlu0 0
        %706 = vperm.xlu0 %705, %v596
        %v707 = vpop.permute.xlu0 %706
        %710 = vset.pattern.permute.xlu0 0
        %711 = vperm.xlu0 %710, %v597
        %v712 = vpop.permute.xlu0 %711
        %715 = vset.pattern.permute.xlu0 0
        %716 = vperm.xlu0 %715, %v598
        %v717 = vpop.permute.xlu0 %716
        %720 = vset.pattern.permute.xlu0 0
        %721 = vperm.xlu0 %720, %v599
        %v722 = vpop.permute.xlu0 %721
        %725 = vset.pattern.permute.xlu0 0
        %726 = vperm.xlu0 %725, %v600
        %v727 = vpop.permute.xlu0 %726
        %730 = vset.pattern.permute.xlu0 0
        %731 = vperm.xlu0 %730, %v601
        %v732 = vpop.permute.xlu0 %731
        %735 = vset.pattern.permute.xlu0 0
        %736 = vperm.xlu0 %735, %v602
        %v737 = vpop.permute.xlu0 %736
        %740 = vset.pattern.permute.xlu0 0
        %741 = vperm.xlu0 %740, %v603
        %v742 = vpop.permute.xlu0 %741
        %745 = vset.pattern.permute.xlu0 0
        %746 = vperm.xlu0 %745, %v604
        %v747 = vpop.permute.xlu0 %746
        %750 = vset.pattern.permute.xlu0 0
        %751 = vperm.xlu0 %750, %v605
        %v752 = vpop.permute.xlu0 %751
        %755 = vset.pattern.permute.xlu0 0
        %756 = vperm.xlu0 %755, %v606
        %v757 = vpop.permute.xlu0 %756
        %760 = vset.pattern.permute.xlu0 0
        %761 = vperm.xlu0 %760, %v607
        %v762 = vpop.permute.xlu0 %761
        %765 = vset.pattern.permute.xlu0 0
        %766 = vperm.xlu0 %765, %v608
        %v767 = vpop.permute.xlu0 %766
        %v801 = vunpack.c.l.b16 %v401
        %v802 = vunpack.c.l.b16 %v402
        %v803 = vunpack.c.l.b16 %v403
        %v804 = vunpack.c.l.b16 %v404
        %v805 = vunpack.c.l.b16 %v405
        %v806 = vunpack.c.l.b16 %v406
        %v807 = vunpack.c.l.b16 %v407
        %v808 = vunpack.c.l.b16 %v408
        %v809 = vunpack.c.l.b16 %v409
        %v810 = vunpack.c.l.b16 %v410
        %v811 = vunpack.c.l.b16 %v411
        %v812 = vunpack.c.l.b16 %v412
        %v813 = vunpack.c.l.b16 %v413
        %v814 = vunpack.c.l.b16 %v414
        %v815 = vunpack.c.l.b16 %v415
        %v816 = vunpack.c.l.b16 %v416
        %v817 = vunpack.c.l.b16 %v417
        %v818 = vunpack.c.l.b16 %v418
        %v819 = vunpack.c.l.b16 %v419
        %v820 = vunpack.c.l.b16 %v420
        %v821 = vunpack.c.l.b16 %v421
        %v822 = vunpack.c.l.b16 %v422
        %v823 = vunpack.c.l.b16 %v423
        %v824 = vunpack.c.l.b16 %v424
        %v825 = vunpack.c.l.b16 %v425
        %v826 = vunpack.c.l.b16 %v426
        %v827 = vunpack.c.l.b16 %v427
        %v828 = vunpack.c.l.b16 %v428
        %v829 = vunpack.c.l.b16 %v429
        %v830 = vunpack.c.l.b16 %v430
        %v831 = vunpack.c.l.b16 %v431
        %v832 = vunpack.c.l.b16 %v432
        %v833 = vpack.c.b16 %v802, %v801
        %v834 = vpack.c.b16 %v804, %v803
        %v835 = vpack.c.b16 %v806, %v805
        %v836 = vpack.c.b16 %v808, %v807
        %v837 = vpack.c.b16 %v810, %v809
        %v838 = vpack.c.b16 %v812, %v811
        %v839 = vpack.c.b16 %v814, %v813
        %v840 = vpack.c.b16 %v816, %v815
        %v841 = vpack.c.b16 %v818, %v817
        %v842 = vpack.c.b16 %v820, %v819
        %v843 = vpack.c.b16 %v822, %v821
        %v844 = vpack.c.b16 %v824, %v823
        %v845 = vpack.c.b16 %v826, %v825
        %v846 = vpack.c.b16 %v828, %v827
        %v847 = vpack.c.b16 %v830, %v829
        %v848 = vpack.c.b16 %v832, %v831
        %vm849 = vcmask 64512
        %v851 = vsel %vm849, %v833, 0
        %v854 = vsel %vm849, %v834, 0
        %v857 = vsel %vm849, %v835, 0
        %v860 = vsel %vm849, %v836, 0
        %v863 = vsel %vm849, %v837, 0
        %v866 = vsel %vm849, %v838, 0
        %v869 = vsel %vm849, %v839, 0
        %v872 = vsel %vm849, %v840, 0
        %v875 = vsel %vm849, %v841, 0
        %v878 = vsel %vm849, %v842, 0
        %v881 = vsel %vm849, %v843, 0
        %v884 = vsel %vm849, %v844, 0
        %v887 = vsel %vm849, %v845, 0
        %v890 = vsel %vm849, %v846, 0
        %v893 = vsel %vm849, %v847, 0
        %v896 = vsel %vm849, %v848, 0
        %v899 = vsel %vm849, %v529, 0
        %v902 = vsel %vm849, %v530, 0
        %v905 = vsel %vm849, %v531, 0
        %v908 = vsel %vm849, %v532, 0
        %v911 = vsel %vm849, %v533, 0
        %v914 = vsel %vm849, %v534, 0
        %v917 = vsel %vm849, %v535, 0
        %v920 = vsel %vm849, %v536, 0
        %v923 = vsel %vm849, %v537, 0
        %v926 = vsel %vm849, %v538, 0
        %v929 = vsel %vm849, %v539, 0
        %v932 = vsel %vm849, %v540, 0
        %v935 = vsel %vm849, %v541, 0
        %v938 = vsel %vm849, %v542, 0
        %v941 = vsel %vm849, %v543, 0
        %v944 = vsel %vm849, %v544, 0
        %v947 = vsel %vm849, %v545, 0
        %v950 = vsel %vm849, %v546, 0
        %v953 = vsel %vm849, %v547, 0
        %v956 = vsel %vm849, %v548, 0
        %v959 = vsel %vm849, %v549, 0
        %v962 = vsel %vm849, %v550, 0
        %v965 = vsel %vm849, %v551, 0
        %v968 = vsel %vm849, %v552, 0
        %v971 = vsel %vm849, %v553, 0
        %v974 = vsel %vm849, %v554, 0
        %v977 = vsel %vm849, %v555, 0
        %v980 = vsel %vm849, %v556, 0
        %v983 = vsel %vm849, %v557, 0
        %v986 = vsel %vm849, %v558, 0
        %v989 = vsel %vm849, %v559, 0
        %v992 = vsel %vm849, %v560, 0
        %v995 = vsel %vm849, %v561, 0
        %v998 = vsel %vm849, %v562, 0
        %v1001 = vsel %vm849, %v563, 0
        %v1004 = vsel %vm849, %v564, 0
        %v1007 = vsel %vm849, %v565, 0
        %v1010 = vsel %vm849, %v566, 0
        %v1013 = vsel %vm849, %v567, 0
        %v1016 = vsel %vm849, %v568, 0
        %v1019 = vsel %vm849, %v569, 0
        %v1022 = vsel %vm849, %v570, 0
        %v1025 = vsel %vm849, %v571, 0
        %v1028 = vsel %vm849, %v572, 0
        %v1031 = vsel %vm849, %v573, 0
        %v1034 = vsel %vm849, %v574, 0
        %v1037 = vsel %vm849, %v575, 0
        %v1040 = vsel %vm849, %v576, 0
        %1042 = vmatprep.subr.bf16.mxu0 0
        %1043 = vmatpush1.bf16.xpose.msra.mxu0 %v899
        %1044 = vmatprep.subr.bf16.mxu0 0
        %1045 = vmatpush1.bf16.xpose.msra.mxu0 %v902
        %1046 = vmatprep.subr.bf16.mxu0 0
        %1047 = vmatpush1.bf16.xpose.msra.mxu0 %v905
        %1048 = vmatprep.subr.bf16.mxu0 0
        %1049 = vmatpush1.bf16.xpose.msra.mxu0 %v908
        %1050 = vmatprep.subr.bf16.mxu0 0
        %1051 = vmatpush1.bf16.xpose.msra.mxu0 %v911
        %1052 = vmatprep.subr.bf16.mxu0 0
        %1053 = vmatpush1.bf16.xpose.msra.mxu0 %v914
        %1054 = vmatprep.subr.bf16.mxu0 0
        %1055 = vmatpush1.bf16.xpose.msra.mxu0 %v917
        %1056 = vmatprep.subr.bf16.mxu0 0
        %1057 = vmatpush1.bf16.xpose.msra.mxu0 %v920
        %1058 = vmatprep.subr.bf16.mxu0 0
        %1059 = vmatpush1.bf16.xpose.msra.mxu0 %v923
        %1060 = vmatprep.subr.bf16.mxu0 0
        %1061 = vmatpush1.bf16.xpose.msra.mxu0 %v926
        %1062 = vmatprep.subr.bf16.mxu0 0
        %1063 = vmatpush1.bf16.xpose.msra.mxu0 %v929
        %1064 = vmatprep.subr.bf16.mxu0 0
        %1065 = vmatpush1.bf16.xpose.msra.mxu0 %v932
        %1066 = vmatprep.subr.bf16.mxu0 0
        %1067 = vmatpush1.bf16.xpose.msra.mxu0 %v935
        %1068 = vmatprep.subr.bf16.mxu0 0
        %1069 = vmatpush1.bf16.xpose.msra.mxu0 %v938
        %1070 = vmatprep.subr.bf16.mxu0 0
        %1071 = vmatpush1.bf16.xpose.msra.mxu0 %v941
        %1072 = vmatprep.subr.bf16.mxu0 0
        %1073 = vmatpush1.bf16.xpose.msra.mxu0 %v944
        %1074 = vmatprep.mubr.bf16.mxu0 0
        %1075 = vmatmul.mubr.bf16.gmra.mrb[0].mxu0 %v851
        %v1076 = vpop.f32.mrb[0].mxu0
        %v1077 = vadd.f32 %v612, %v1076
        %v1078 = vpop.f32.mrb[0].mxu0
        %v1079 = vadd.f32 %v612, %v1078
        %v1080 = vpop.f32.mrb[0].mxu0
        %v1081 = vadd.f32 %v617, %v1080
        %v1082 = vpop.f32.mrb[0].mxu0
        %v1083 = vadd.f32 %v617, %v1082
        %1084 = vmatprep.mubr.bf16.mxu0 0
        %1085 = vmatmul.mubr.bf16.gmra.mrb[0].mxu0 %v854
        %v1086 = vpop.f32.mrb[0].mxu0
        %v1087 = vadd.f32 %v622, %v1086
        %v1088 = vpop.f32.mrb[0].mxu0
        %v1089 = vadd.f32 %v622, %v1088
        %v1090 = vpop.f32.mrb[0].mxu0
        %v1091 = vadd.f32 %v627, %v1090
        %v1092 = vpop.f32.mrb[0].mxu0
        %v1093 = vadd.f32 %v627, %v1092
        %1094 = vmatprep.mubr.bf16.mxu0 0
        %1095 = vmatmul.mubr.bf16.gmra.mrb[0].mxu0 %v857
        %v1096 = vpop.f32.mrb[0].mxu0
        %v1097 = vadd.f32 %v632, %v1096
        %v1098 = vpop.f32.mrb[0].mxu0
        %v1099 = vadd.f32 %v632, %v1098
        %v1100 = vpop.f32.mrb[0].mxu0
        %v1101 = vadd.f32 %v637, %v1100
        %v1102 = vpop.f32.mrb[0].mxu0
        %v1103 = vadd.f32 %v637, %v1102
        %1104 = vmatprep.mubr.bf16.mxu0 0
        %1105 = vmatmul.mubr.bf16.gmra.mrb[0].mxu0 %v860
        %v1106 = vpop.f32.mrb[0].mxu0
        %v1107 = vadd.f32 %v642, %v1106
        %v1108 = vpop.f32.mrb[0].mxu0
        %v1109 = vadd.f32 %v642, %v1108
        %v1110 = vpop.f32.mrb[0].mxu0
        %v1111 = vadd.f32 %v647, %v1110
        %v1112 = vpop.f32.mrb[0].mxu0
        %v1113 = vadd.f32 %v647, %v1112
        %1114 = vmatprep.mubr.bf16.mxu0 0
        %1115 = vmatmul.mubr.bf16.gmra.mrb[0].mxu0 %v863
        %v1116 = vpop.f32.mrb[0].mxu0
        %v1117 = vadd.f32 %v652, %v1116
        %v1118 = vpop.f32.mrb[0].mxu0
        %v1119 = vadd.f32 %v652, %v1118
        %v1120 = vpop.f32.mrb[0].mxu0
        %v1121 = vadd.f32 %v657, %v1120
        %v1122 = vpop.f32.mrb[0].mxu0
        %v1123 = vadd.f32 %v657, %v1122
        %1124 = vmatprep.mubr.bf16.mxu0 0
        %1125 = vmatmul.mubr.bf16.gmra.mrb[0].mxu0 %v866
        %v1126 = vpop.f32.mrb[0].mxu0
        %v1127 = vadd.f32 %v662, %v1126
        %v1128 = vpop.f32.mrb[0].mxu0
        %v1129 = vadd.f32 %v662, %v1128
        %v1130 = vpop.f32.mrb[0].mxu0
        %v1131 = vadd.f32 %v667, %v1130
        %v1132 = vpop.f32.mrb[0].mxu0
        %v1133 = vadd.f32 %v667, %v1132
        %1134 = vmatprep.mubr.bf16.mxu0 0
        %1135 = vmatmul.mubr.bf16.gmra.mrb[0].mxu0 %v869
        %v1136 = vpop.f32.mrb[0].mxu0
        %v1137 = vadd.f32 %v672, %v1136
        %v1138 = vpop.f32.mrb[0].mxu0
        %v1139 = vadd.f32 %v672, %v1138
        %v1140 = vpop.f32.mrb[0].mxu0
        %v1141 = vadd.f32 %v677, %v1140
        %v1142 = vpop.f32.mrb[0].mxu0
        %v1143 = vadd.f32 %v677, %v1142
        %1144 = vmatprep.mubr.bf16.mxu0 0
        %1145 = vmatmul.mubr.bf16.gmra.mrb[0].mxu0 %v872
        %v1146 = vpop.f32.mrb[0].mxu0
        %v1147 = vadd.f32 %v682, %v1146
        %v1148 = vpop.f32.mrb[0].mxu0
        %v1149 = vadd.f32 %v682, %v1148
        %v1150 = vpop.f32.mrb[0].mxu0
        %v1151 = vadd.f32 %v687, %v1150
        %v1152 = vpop.f32.mrb[0].mxu0
        %v1153 = vadd.f32 %v687, %v1152
        %1154 = vmatprep.mubr.bf16.mxu0 0
        %1155 = vmatmul.mubr.bf16.gmra.mrb[0].mxu0 %v875
        %v1156 = vpop.f32.mrb[0].mxu0
        %v1157 = vadd.f32 %v692, %v1156
        %v1158 = vpop.f32.mrb[0].mxu0
        %v1159 = vadd.f32 %v692, %v1158
        %v1160 = vpop.f32.mrb[0].mxu0
        %v1161 = vadd.f32 %v697, %v1160
        %v1162 = vpop.f32.mrb[0].mxu0
        %v1163 = vadd.f32 %v697, %v1162
        %1164 = vmatprep.mubr.bf16.mxu0 0
        %1165 = vmatmul.mubr.bf16.gmra.mrb[0].mxu0 %v878
        %v1166 = vpop.f32.mrb[0].mxu0
        %v1167 = vadd.f32 %v702, %v1166
        %v1168 = vpop.f32.mrb[0].mxu0
        %v1169 = vadd.f32 %v702, %v1168
        %v1170 = vpop.f32.mrb[0].mxu0
        %v1171 = vadd.f32 %v707, %v1170
        %v1172 = vpop.f32.mrb[0].mxu0
        %v1173 = vadd.f32 %v707, %v1172
        %1174 = vmatprep.mubr.bf16.mxu0 0
        %1175 = vmatmul.mubr.bf16.gmra.mrb[0].mxu0 %v881
        %v1176 = vpop.f32.mrb[0].mxu0
        %v1177 = vadd.f32 %v712, %v1176
        %v1178 = vpop.f32.mrb[0].mxu0
        %v1179 = vadd.f32 %v712, %v1178
        %v1180 = vpop.f32.mrb[0].mxu0
        %v1181 = vadd.f32 %v717, %v1180
        %v1182 = vpop.f32.mrb[0].mxu0
        %v1183 = vadd.f32 %v717, %v1182
        %1184 = vmatprep.mubr.bf16.mxu0 0
        %1185 = vmatmul.mubr.bf16.gmra.mrb[0].mxu0 %v884
        %v1186 = vpop.f32.mrb[0].mxu0
        %v1187 = vadd.f32 %v722, %v1186
        %v1188 = vpop.f32.mrb[0].mxu0
        %v1189 = vadd.f32 %v722, %v1188
        %v1190 = vpop.f32.mrb[0].mxu0
        %v1191 = vadd.f32 %v727, %v1190
        %v1192 = vpop.f32.mrb[0].mxu0
        %v1193 = vadd.f32 %v727, %v1192
        %1194 = vmatprep.mubr.bf16.mxu0 0
        %1195 = vmatmul.mubr.bf16.gmra.mrb[0].mxu0 %v887
        %v1196 = vpop.f32.mrb[0].mxu0
        %v1197 = vadd.f32 %v732, %v1196
        %v1198 = vpop.f32.mrb[0].mxu0
        %v1199 = vadd.f32 %v732, %v1198
        %v1200 = vpop.f32.mrb[0].mxu0
        %v1201 = vadd.f32 %v737, %v1200
        %v1202 = vpop.f32.mrb[0].mxu0
        %v1203 = vadd.f32 %v737, %v1202
        %1204 = vmatprep.mubr.bf16.mxu0 0
        %1205 = vmatmul.mubr.bf16.gmra.mrb[0].mxu0 %v890
        %v1206 = vpop.f32.mrb[0].mxu0
        %v1207 = vadd.f32 %v742, %v1206
        %v1208 = vpop.f32.mrb[0].mxu0
        %v1209 = vadd.f32 %v742, %v1208
        %v1210 = vpop.f32.mrb[0].mxu0
        %v1211 = vadd.f32 %v747, %v1210
        %v1212 = vpop.f32.mrb[0].mxu0
        %v1213 = vadd.f32 %v747, %v1212
        %1214 = vmatprep.mubr.bf16.mxu0 0
        %1215 = vmatmul.mubr.bf16.gmra.mrb[0].mxu0 %v893
        %v1216 = vpop.f32.mrb[0].mxu0
        %v1217 = vadd.f32 %v752, %v1216
        %v1218 = vpop.f32.mrb[0].mxu0
        %v1219 = vadd.f32 %v752, %v1218
        %v1220 = vpop.f32.mrb[0].mxu0
        %v1221 = vadd.f32 %v757, %v1220
        %v1222 = vpop.f32.mrb[0].mxu0
        %v1223 = vadd.f32 %v757, %v1222
        %1224 = vmatprep.mubr.bf16.mxu0 0
        %1225 = vmatmul.mubr.bf16.gmra.mrb[0].mxu0 %v896
        %v1226 = vpop.f32.mrb[0].mxu0
        %v1227 = vadd.f32 %v762, %v1226
        %v1228 = vpop.f32.mrb[0].mxu0
        %v1229 = vadd.f32 %v762, %v1228
        %v1230 = vpop.f32.mrb[0].mxu0
        %v1231 = vadd.f32 %v767, %v1230
        %v1232 = vpop.f32.mrb[0].mxu0
        %v1233 = vadd.f32 %v767, %v1232
        %1234 = vdwg.mxu0
        %1235 = vmatprep.subr.bf16.mxu0 0
        %1236 = vmatpush1.bf16.xpose.msra.mxu0 %v947
        %1237 = vmatprep.subr.bf16.mxu0 0
        %1238 = vmatpush1.bf16.xpose.msra.mxu0 %v950
        %1239 = vmatprep.subr.bf16.mxu0 0
        %1240 = vmatpush1.bf16.xpose.msra.mxu0 %v953
        %1241 = vmatprep.subr.bf16.mxu0 0
        %1242 = vmatpush1.bf16.xpose.msra.mxu0 %v956
        %1243 = vmatprep.subr.bf16.mxu0 0
        %1244 = vmatpush1.bf16.xpose.msra.mxu0 %v959
        %1245 = vmatprep.subr.bf16.mxu0 0
        %1246 = vmatpush1.bf16.xpose.msra.mxu0 %v962
        %1247 = vmatprep.subr.bf16.mxu0 0
        %1248 = vmatpush1.bf16.xpose.msra.mxu0 %v965
        %1249 = vmatprep.subr.bf16.mxu0 0
        %1250 = vmatpush1.bf16.xpose.msra.mxu0 %v968
        %1251 = vmatprep.subr.bf16.mxu0 0
        %1252 = vmatpush1.bf16.xpose.msra.mxu0 %v971
        %1253 = vmatprep.subr.bf16.mxu0 0
        %1254 = vmatpush1.bf16.xpose.msra.mxu0 %v974
        %1255 = vmatprep.subr.bf16.mxu0 0
        %1256 = vmatpush1.bf16.xpose.msra.mxu0 %v977
        %1257 = vmatprep.subr.bf16.mxu0 0
        %1258 = vmatpush1.bf16.xpose.msra.mxu0 %v980
        %1259 = vmatprep.subr.bf16.mxu0 0
        %1260 = vmatpush1.bf16.xpose.msra.mxu0 %v983
        %1261 = vmatprep.subr.bf16.mxu0 0
        %1262 = vmatpush1.bf16.xpose.msra.mxu0 %v986
        %1263 = vmatprep.subr.bf16.mxu0 0
        %1264 = vmatpush1.bf16.xpose.msra.mxu0 %v989
        %1265 = vmatprep.subr.bf16.mxu0 0
        %1266 = vmatpush1.bf16.xpose.msra.mxu0 %v992
        %1267 = vmatprep.mubr.bf16.mxu0 0
        %1268 = vmatmul.mubr.bf16.gmra.mrb[0].mxu0 %v851
        %v1269 = vpop.f32.mrb[0].mxu0
        %v1270 = vadd.f32 %v612, %v1269
        %v1271 = vpop.f32.mrb[0].mxu0
        %v1272 = vadd.f32 %v612, %v1271
        %v1273 = vpop.f32.mrb[0].mxu0
        %v1274 = vadd.f32 %v617, %v1273
        %v1275 = vpop.f32.mrb[0].mxu0
        %v1276 = vadd.f32 %v617, %v1275
        %1277 = vmatprep.mubr.bf16.mxu0 0
        %1278 = vmatmul.mubr.bf16.gmra.mrb[0].mxu0 %v854
        %v1279 = vpop.f32.mrb[0].mxu0
        %v1280 = vadd.f32 %v622, %v1279
        %v1281 = vpop.f32.mrb[0].mxu0
        %v1282 = vadd.f32 %v622, %v1281
        %v1283 = vpop.f32.mrb[0].mxu0
        %v1284 = vadd.f32 %v627, %v1283
        %v1285 = vpop.f32.mrb[0].mxu0
        %v1286 = vadd.f32 %v627, %v1285
        %1287 = vmatprep.mubr.bf16.mxu0 0
        %1288 = vmatmul.mubr.bf16.gmra.mrb[0].mxu0 %v857
        %v1289 = vpop.f32.mrb[0].mxu0
        %v1290 = vadd.f32 %v632, %v1289
        %v1291 = vpop.f32.mrb[0].mxu0
        %v1292 = vadd.f32 %v632, %v1291
        %v1293 = vpop.f32.mrb[0].mxu0
        %v1294 = vadd.f32 %v637, %v1293
        %v1295 = vpop.f32.mrb[0].mxu0
        %v1296 = vadd.f32 %v637, %v1295
        %1297 = vmatprep.mubr.bf16.mxu0 0
        %1298 = vmatmul.mubr.bf16.gmra.mrb[0].mxu0 %v860
        %v1299 = vpop.f32.mrb[0].mxu0
        %v1300 = vadd.f32 %v642, %v1299
        %v1301 = vpop.f32.mrb[0].mxu0
        %v1302 = vadd.f32 %v642, %v1301
        %v1303 = vpop.f32.mrb[0].mxu0
        %v1304 = vadd.f32 %v647, %v1303
        %v1305 = vpop.f32.mrb[0].mxu0
        %v1306 = vadd.f32 %v647, %v1305
        %1307 = vmatprep.mubr.bf16.mxu0 0
        %1308 = vmatmul.mubr.bf16.gmra.mrb[0].mxu0 %v863
        %v1309 = vpop.f32.mrb[0].mxu0
        %v1310 = vadd.f32 %v652, %v1309
        %v1311 = vpop.f32.mrb[0].mxu0
        %v1312 = vadd.f32 %v652, %v1311
        %v1313 = vpop.f32.mrb[0].mxu0
        %v1314 = vadd.f32 %v657, %v1313
        %v1315 = vpop.f32.mrb[0].mxu0
        %v1316 = vadd.f32 %v657, %v1315
        %1317 = vmatprep.mubr.bf16.mxu0 0
        %1318 = vmatmul.mubr.bf16.gmra.mrb[0].mxu0 %v866
        %v1319 = vpop.f32.mrb[0].mxu0
        %v1320 = vadd.f32 %v662, %v1319
        %v1321 = vpop.f32.mrb[0].mxu0
        %v1322 = vadd.f32 %v662, %v1321
        %v1323 = vpop.f32.mrb[0].mxu0
        %v1324 = vadd.f32 %v667, %v1323
        %v1325 = vpop.f32.mrb[0].mxu0
        %v1326 = vadd.f32 %v667, %v1325
        %1327 = vmatprep.mubr.bf16.mxu0 0
        %1328 = vmatmul.mubr.bf16.gmra.mrb[0].mxu0 %v869
        %v1329 = vpop.f32.mrb[0].mxu0
        %v1330 = vadd.f32 %v672, %v1329
        %v1331 = vpop.f32.mrb[0].mxu0
        %v1332 = vadd.f32 %v672, %v1331
        %v1333 = vpop.f32.mrb[0].mxu0
        %v1334 = vadd.f32 %v677, %v1333
        %v1335 = vpop.f32.mrb[0].mxu0
        %v1336 = vadd.f32 %v677, %v1335
        %1337 = vmatprep.mubr.bf16.mxu0 0
        %1338 = vmatmul.mubr.bf16.gmra.mrb[0].mxu0 %v872
        %v1339 = vpop.f32.mrb[0].mxu0
        %v1340 = vadd.f32 %v682, %v1339
        %v1341 = vpop.f32.mrb[0].mxu0
        %v1342 = vadd.f32 %v682, %v1341
        %v1343 = vpop.f32.mrb[0].mxu0
        %v1344 = vadd.f32 %v687, %v1343
        %v1345 = vpop.f32.mrb[0].mxu0
        %v1346 = vadd.f32 %v687, %v1345
        %1347 = vmatprep.mubr.bf16.mxu0 0
        %1348 = vmatmul.mubr.bf16.gmra.mrb[0].mxu0 %v875
        %v1349 = vpop.f32.mrb[0].mxu0
        %v1350 = vadd.f32 %v692, %v1349
        %v1351 = vpop.f32.mrb[0].mxu0
        %v1352 = vadd.f32 %v692, %v1351
        %v1353 = vpop.f32.mrb[0].mxu0
        %v1354 = vadd.f32 %v697, %v1353
        %v1355 = vpop.f32.mrb[0].mxu0
        %v1356 = vadd.f32 %v697, %v1355
        %1357 = vmatprep.mubr.bf16.mxu0 0
        %1358 = vmatmul.mubr.bf16.gmra.mrb[0].mxu0 %v878
        %v1359 = vpop.f32.mrb[0].mxu0
        %v1360 = vadd.f32 %v702, %v1359
        %v1361 = vpop.f32.mrb[0].mxu0
        %v1362 = vadd.f32 %v702, %v1361
        %v1363 = vpop.f32.mrb[0].mxu0
        %v1364 = vadd.f32 %v707, %v1363
        %v1365 = vpop.f32.mrb[0].mxu0
        %v1366 = vadd.f32 %v707, %v1365
        %1367 = vmatprep.mubr.bf16.mxu0 0
        %1368 = vmatmul.mubr.bf16.gmra.mrb[0].mxu0 %v881
        %v1369 = vpop.f32.mrb[0].mxu0
        %v1370 = vadd.f32 %v712, %v1369
        %v1371 = vpop.f32.mrb[0].mxu0
        %v1372 = vadd.f32 %v712, %v1371
        %v1373 = vpop.f32.mrb[0].mxu0
        %v1374 = vadd.f32 %v717, %v1373
        %v1375 = vpop.f32.mrb[0].mxu0
        %v1376 = vadd.f32 %v717, %v1375
        %1377 = vmatprep.mubr.bf16.mxu0 0
        %1378 = vmatmul.mubr.bf16.gmra.mrb[0].mxu0 %v884
        %v1379 = vpop.f32.mrb[0].mxu0
        %v1380 = vadd.f32 %v722, %v1379
        %v1381 = vpop.f32.mrb[0].mxu0
        %v1382 = vadd.f32 %v722, %v1381
        %v1383 = vpop.f32.mrb[0].mxu0
        %v1384 = vadd.f32 %v727, %v1383
        %v1385 = vpop.f32.mrb[0].mxu0
        %v1386 = vadd.f32 %v727, %v1385
        %1387 = vmatprep.mubr.bf16.mxu0 0
        %1388 = vmatmul.mubr.bf16.gmra.mrb[0].mxu0 %v887
        %v1389 = vpop.f32.mrb[0].mxu0
        %v1390 = vadd.f32 %v732, %v1389
        %v1391 = vpop.f32.mrb[0].mxu0
        %v1392 = vadd.f32 %v732, %v1391
        %v1393 = vpop.f32.mrb[0].mxu0
        %v1394 = vadd.f32 %v737, %v1393
        %v1395 = vpop.f32.mrb[0].mxu0
        %v1396 = vadd.f32 %v737, %v1395
        %1397 = vmatprep.mubr.bf16.mxu0 0
        %1398 = vmatmul.mubr.bf16.gmra.mrb[0].mxu0 %v890
        %v1399 = vpop.f32.mrb[0].mxu0
        %v1400 = vadd.f32 %v742, %v1399
        %v1401 = vpop.f32.mrb[0].mxu0
        %v1402 = vadd.f32 %v742, %v1401
        %v1403 = vpop.f32.mrb[0].mxu0
        %v1404 = vadd.f32 %v747, %v1403
        %v1405 = vpop.f32.mrb[0].mxu0
        %v1406 = vadd.f32 %v747, %v1405
        %1407 = vmatprep.mubr.bf16.mxu0 0
        %1408 = vmatmul.mubr.bf16.gmra.mrb[0].mxu0 %v893
        %v1409 = vpop.f32.mrb[0].mxu0
        %v1410 = vadd.f32 %v752, %v1409
        %v1411 = vpop.f32.mrb[0].mxu0
        %v1412 = vadd.f32 %v752, %v1411
        %v1413 = vpop.f32.mrb[0].mxu0
        %v1414 = vadd.f32 %v757, %v1413
        %v1415 = vpop.f32.mrb[0].mxu0
        %v1416 = vadd.f32 %v757, %v1415
        %1417 = vmatprep.mubr.bf16.mxu0 0
        %1418 = vmatmul.mubr.bf16.gmra.mrb[0].mxu0 %v896
        %v1419 = vpop.f32.mrb[0].mxu0
        %v1420 = vadd.f32 %v762, %v1419
        %v1421 = vpop.f32.mrb[0].mxu0
        %v1422 = vadd.f32 %v762, %v1421
        %v1423 = vpop.f32.mrb[0].mxu0
        %v1424 = vadd.f32 %v767, %v1423
        %v1425 = vpop.f32.mrb[0].mxu0
        %v1426 = vadd.f32 %v767, %v1425
        %1427 = vdwg.mxu0
        %1428 = vmatprep.subr.bf16.mxu0 0
        %1429 = vmatpush1.bf16.xpose.msra.mxu0 %v995
        %1430 = vmatprep.subr.bf16.mxu0 0
        %1431 = vmatpush1.bf16.xpose.msra.mxu0 %v998
        %1432 = vmatprep.subr.bf16.mxu0 0
        %1433 = vmatpush1.bf16.xpose.msra.mxu0 %v1001
        %1434 = vmatprep.subr.bf16.mxu0 0
        %1435 = vmatpush1.bf16.xpose.msra.mxu0 %v1004
        %1436 = vmatprep.subr.bf16.mxu0 0
        %1437 = vmatpush1.bf16.xpose.msra.mxu0 %v1007
        %1438 = vmatprep.subr.bf16.mxu0 0
        %1439 = vmatpush1.bf16.xpose.msra.mxu0 %v1010
        %1440 = vmatprep.subr.bf16.mxu0 0
        %1441 = vmatpush1.bf16.xpose.msra.mxu0 %v1013
        %1442 = vmatprep.subr.bf16.mxu0 0
        %1443 = vmatpush1.bf16.xpose.msra.mxu0 %v1016
        %1444 = vmatprep.subr.bf16.mxu0 0
        %1445 = vmatpush1.bf16.xpose.msra.mxu0 %v1019
        %1446 = vmatprep.subr.bf16.mxu0 0
        %1447 = vmatpush1.bf16.xpose.msra.mxu0 %v1022
        %1448 = vmatprep.subr.bf16.mxu0 0
        %1449 = vmatpush1.bf16.xpose.msra.mxu0 %v1025
        %1450 = vmatprep.subr.bf16.mxu0 0
        %1451 = vmatpush1.bf16.xpose.msra.mxu0 %v1028
        %1452 = vmatprep.subr.bf16.mxu0 0
        %1453 = vmatpush1.bf16.xpose.msra.mxu0 %v1031
        %1454 = vmatprep.subr.bf16.mxu0 0
        %1455 = vmatpush1.bf16.xpose.msra.mxu0 %v1034
        %1456 = vmatprep.subr.bf16.mxu0 0
        %1457 = vmatpush1.bf16.xpose.msra.mxu0 %v1037
        %1458 = vmatprep.subr.bf16.mxu0 0
        %1459 = vmatpush1.bf16.xpose.msra.mxu0 %v1040
        %1460 = vmatprep.mubr.bf16.mxu0 0
        %1461 = vmatmul.mubr.bf16.gmra.mrb[0].mxu0 %v851
        %v1462 = vpop.f32.mrb[0].mxu0
        %v1463 = vadd.f32 %v612, %v1462
        %v1464 = vpop.f32.mrb[0].mxu0
        %v1465 = vadd.f32 %v612, %v1464
        %v1466 = vpop.f32.mrb[0].mxu0
        %v1467 = vadd.f32 %v617, %v1466
        %v1468 = vpop.f32.mrb[0].mxu0
        %v1469 = vadd.f32 %v617, %v1468
        %1470 = vmatprep.mubr.bf16.mxu0 0
        %1471 = vmatmul.mubr.bf16.gmra.mrb[0].mxu0 %v854
        %v1472 = vpop.f32.mrb[0].mxu0
        %v1473 = vadd.f32 %v622, %v1472
        %v1474 = vpop.f32.mrb[0].mxu0
        %v1475 = vadd.f32 %v622, %v1474
        %v1476 = vpop.f32.mrb[0].mxu0
        %v1477 = vadd.f32 %v627, %v1476
        %v1478 = vpop.f32.mrb[0].mxu0
        %v1479 = vadd.f32 %v627, %v1478
        %1480 = vmatprep.mubr.bf16.mxu0 0
        %1481 = vmatmul.mubr.bf16.gmra.mrb[0].mxu0 %v857
        %v1482 = vpop.f32.mrb[0].mxu0
        %v1483 = vadd.f32 %v632, %v1482
        %v1484 = vpop.f32.mrb[0].mxu0
        %v1485 = vadd.f32 %v632, %v1484
        %v1486 = vpop.f32.mrb[0].mxu0
        %v1487 = vadd.f32 %v637, %v1486
        %v1488 = vpop.f32.mrb[0].mxu0
        %v1489 = vadd.f32 %v637, %v1488
        %1490 = vmatprep.mubr.bf16.mxu0 0
        %1491 = vmatmul.mubr.bf16.gmra.mrb[0].mxu0 %v860
        %v1492 = vpop.f32.mrb[0].mxu0
        %v1493 = vadd.f32 %v642, %v1492
        %v1494 = vpop.f32.mrb[0].mxu0
        %v1495 = vadd.f32 %v642, %v1494
        %v1496 = vpop.f32.mrb[0].mxu0
        %v1497 = vadd.f32 %v647, %v1496
        %v1498 = vpop.f32.mrb[0].mxu0
        %v1499 = vadd.f32 %v647, %v1498
        %1500 = vmatprep.mubr.bf16.mxu0 0
        %1501 = vmatmul.mubr.bf16.gmra.mrb[0].mxu0 %v863
        %v1502 = vpop.f32.mrb[0].mxu0
        %v1503 = vadd.f32 %v652, %v1502
        %v1504 = vpop.f32.mrb[0].mxu0
        %v1505 = vadd.f32 %v652, %v1504
        %v1506 = vpop.f32.mrb[0].mxu0
        %v1507 = vadd.f32 %v657, %v1506
        %v1508 = vpop.f32.mrb[0].mxu0
        %v1509 = vadd.f32 %v657, %v1508
        %1510 = vmatprep.mubr.bf16.mxu0 0
        %1511 = vmatmul.mubr.bf16.gmra.mrb[0].mxu0 %v866
        %v1512 = vpop.f32.mrb[0].mxu0
        %v1513 = vadd.f32 %v662, %v1512
        %v1514 = vpop.f32.mrb[0].mxu0
        %v1515 = vadd.f32 %v662, %v1514
        %v1516 = vpop.f32.mrb[0].mxu0
        %v1517 = vadd.f32 %v667, %v1516
        %v1518 = vpop.f32.mrb[0].mxu0
        %v1519 = vadd.f32 %v667, %v1518
        %1520 = vmatprep.mubr.bf16.mxu0 0
        %1521 = vmatmul.mubr.bf16.gmra.mrb[0].mxu0 %v869
        %v1522 = vpop.f32.mrb[0].mxu0
        %v1523 = vadd.f32 %v672, %v1522
        %v1524 = vpop.f32.mrb[0].mxu0
        %v1525 = vadd.f32 %v672, %v1524
        %v1526 = vpop.f32.mrb[0].mxu0
        %v1527 = vadd.f32 %v677, %v1526
        %v1528 = vpop.f32.mrb[0].mxu0
        %v1529 = vadd.f32 %v677, %v1528
        %1530 = vmatprep.mubr.bf16.mxu0 0
        %1531 = vmatmul.mubr.bf16.gmra.mrb[0].mxu0 %v872
        %v1532 = vpop.f32.mrb[0].mxu0
        %v1533 = vadd.f32 %v682, %v1532
        %v1534 = vpop.f32.mrb[0].mxu0
        %v1535 = vadd.f32 %v682, %v1534
        %v1536 = vpop.f32.mrb[0].mxu0
        %v1537 = vadd.f32 %v687, %v1536
        %v1538 = vpop.f32.mrb[0].mxu0
        %v1539 = vadd.f32 %v687, %v1538
        %1540 = vmatprep.mubr.bf16.mxu0 0
        %1541 = vmatmul.mubr.bf16.gmra.mrb[0].mxu0 %v875
        %v1542 = vpop.f32.mrb[0].mxu0
        %v1543 = vadd.f32 %v692, %v1542
        %v1544 = vpop.f32.mrb[0].mxu0
        %v1545 = vadd.f32 %v692, %v1544
        %v1546 = vpop.f32.mrb[0].mxu0
        %v1547 = vadd.f32 %v697, %v1546
        %v1548 = vpop.f32.mrb[0].mxu0
        %v1549 = vadd.f32 %v697, %v1548
        %1550 = vmatprep.mubr.bf16.mxu0 0
        %1551 = vmatmul.mubr.bf16.gmra.mrb[0].mxu0 %v878
        %v1552 = vpop.f32.mrb[0].mxu0
        %v1553 = vadd.f32 %v702, %v1552
        %v1554 = vpop.f32.mrb[0].mxu0
        %v1555 = vadd.f32 %v702, %v1554
        %v1556 = vpop.f32.mrb[0].mxu0
        %v1557 = vadd.f32 %v707, %v1556
        %v1558 = vpop.f32.mrb[0].mxu0
        %v1559 = vadd.f32 %v707, %v1558
        %1560 = vmatprep.mubr.bf16.mxu0 0
        %1561 = vmatmul.mubr.bf16.gmra.mrb[0].mxu0 %v881
        %v1562 = vpop.f32.mrb[0].mxu0
        %v1563 = vadd.f32 %v712, %v1562
        %v1564 = vpop.f32.mrb[0].mxu0
        %v1565 = vadd.f32 %v712, %v1564
        %v1566 = vpop.f32.mrb[0].mxu0
        %v1567 = vadd.f32 %v717, %v1566
        %v1568 = vpop.f32.mrb[0].mxu0
        %v1569 = vadd.f32 %v717, %v1568
        %1570 = vmatprep.mubr.bf16.mxu0 0
        %1571 = vmatmul.mubr.bf16.gmra.mrb[0].mxu0 %v884
        %v1572 = vpop.f32.mrb[0].mxu0
        %v1573 = vadd.f32 %v722, %v1572
        %v1574 = vpop.f32.mrb[0].mxu0
        %v1575 = vadd.f32 %v722, %v1574
        %v1576 = vpop.f32.mrb[0].mxu0
        %v1577 = vadd.f32 %v727, %v1576
        %v1578 = vpop.f32.mrb[0].mxu0
        %v1579 = vadd.f32 %v727, %v1578
        %1580 = vmatprep.mubr.bf16.mxu0 0
        %1581 = vmatmul.mubr.bf16.gmra.mrb[0].mxu0 %v887
        %v1582 = vpop.f32.mrb[0].mxu0
        %v1583 = vadd.f32 %v732, %v1582
        %v1584 = vpop.f32.mrb[0].mxu0
        %v1585 = vadd.f32 %v732, %v1584
        %v1586 = vpop.f32.mrb[0].mxu0
        %v1587 = vadd.f32 %v737, %v1586
        %v1588 = vpop.f32.mrb[0].mxu0
        %v1589 = vadd.f32 %v737, %v1588
        %1590 = vmatprep.mubr.bf16.mxu0 0
        %1591 = vmatmul.mubr.bf16.gmra.mrb[0].mxu0 %v890
        %v1592 = vpop.f32.mrb[0].mxu0
        %v1593 = vadd.f32 %v742, %v1592
        %v1594 = vpop.f32.mrb[0].mxu0
        %v1595 = vadd.f32 %v742, %v1594
        %v1596 = vpop.f32.mrb[0].mxu0
        %v1597 = vadd.f32 %v747, %v1596
        %v1598 = vpop.f32.mrb[0].mxu0
        %v1599 = vadd.f32 %v747, %v1598
        %1600 = vmatprep.mubr.bf16.mxu0 0
        %1601 = vmatmul.mubr.bf16.gmra.mrb[0].mxu0 %v893
        %v1602 = vpop.f32.mrb[0].mxu0
        %v1603 = vadd.f32 %v752, %v1602
        %v1604 = vpop.f32.mrb[0].mxu0
        %v1605 = vadd.f32 %v752, %v1604
        %v1606 = vpop.f32.mrb[0].mxu0
        %v1607 = vadd.f32 %v757, %v1606
        %v1608 = vpop.f32.mrb[0].mxu0
        %v1609 = vadd.f32 %v757, %v1608
        %1610 = vmatprep.mubr.bf16.mxu0 0
        %1611 = vmatmul.mubr.bf16.gmra.mrb[0].mxu0 %v896
        %v1612 = vpop.f32.mrb[0].mxu0
        %v1613 = vadd.f32 %v762, %v1612
        %v1614 = vpop.f32.mrb[0].mxu0
        %v1615 = vadd.f32 %v762, %v1614
        %v1616 = vpop.f32.mrb[0].mxu0
        %v1617 = vadd.f32 %v767, %v1616
        %v1618 = vpop.f32.mrb[0].mxu0
        %v1619 = vadd.f32 %v767, %v1618
        %1620 = vdwg.mxu0
        %v1621 = vtanh.pop %v1077
        %v1622 = vtanh.pop %v1079
        %v1623 = vtanh.pop %v1270
        %v1624 = vtanh.pop %v1272
        %v1625 = vtanh.pop %v1463
        %v1626 = vtanh.pop %v1465
        %v1627 = vtanh.pop %v1081
        %v1628 = vtanh.pop %v1083
        %v1629 = vtanh.pop %v1274
        %v1630 = vtanh.pop %v1276
        %v1631 = vtanh.pop %v1467
        %v1632 = vtanh.pop %v1469
        %v1633 = vtanh.pop %v1087
        %v1634 = vtanh.pop %v1089
        %v1635 = vtanh.pop %v1280
        %v1636 = vtanh.pop %v1282
        %v1637 = vtanh.pop %v1473
        %v1638 = vtanh.pop %v1475
        %v1639 = vtanh.pop %v1091
        %v1640 = vtanh.pop %v1093
        %v1641 = vtanh.pop %v1284
        %v1642 = vtanh.pop %v1286
        %v1643 = vtanh.pop %v1477
        %v1644 = vtanh.pop %v1479
        %v1645 = vtanh.pop %v1097
        %v1646 = vtanh.pop %v1099
        %v1647 = vtanh.pop %v1290
        %v1648 = vtanh.pop %v1292
        %v1649 = vtanh.pop %v1483
        %v1650 = vtanh.pop %v1485
        %v1651 = vtanh.pop %v1101
        %v1652 = vtanh.pop %v1103
        %v1653 = vtanh.pop %v1294
        %v1654 = vtanh.pop %v1296
        %v1655 = vtanh.pop %v1487
        %v1656 = vtanh.pop %v1489
        %v1657 = vtanh.pop %v1107
        %v1658 = vtanh.pop %v1109
        %v1659 = vtanh.pop %v1300
        %v1660 = vtanh.pop %v1302
        %v1661 = vtanh.pop %v1493
        %v1662 = vtanh.pop %v1495
        %v1663 = vtanh.pop %v1111
        %v1664 = vtanh.pop %v1113
        %v1665 = vtanh.pop %v1304
        %v1666 = vtanh.pop %v1306
        %v1667 = vtanh.pop %v1497
        %v1668 = vtanh.pop %v1499
        %v1669 = vtanh.pop %v1117
        %v1670 = vtanh.pop %v1119
        %v1671 = vtanh.pop %v1310
        %v1672 = vtanh.pop %v1312
        %v1673 = vtanh.pop %v1503
        %v1674 = vtanh.pop %v1505
        %v1675 = vtanh.pop %v1121
        %v1676 = vtanh.pop %v1123
        %v1677 = vtanh.pop %v1314
        %v1678 = vtanh.pop %v1316
        %v1679 = vtanh.pop %v1507
        %v1680 = vtanh.pop %v1509
        %v1681 = vtanh.pop %v1127
        %v1682 = vtanh.pop %v1129
        %v1683 = vtanh.pop %v1320
        %v1684 = vtanh.pop %v1322
        %v1685 = vtanh.pop %v1513
        %v1686 = vtanh.pop %v1515
        %v1687 = vtanh.pop %v1131
        %v1688 = vtanh.pop %v1133
        %v1689 = vtanh.pop %v1324
        %v1690 = vtanh.pop %v1326
        %v1691 = vtanh.pop %v1517
        %v1692 = vtanh.pop %v1519
        %v1693 = vtanh.pop %v1137
        %v1694 = vtanh.pop %v1139
        %v1695 = vtanh.pop %v1330
        %v1696 = vtanh.pop %v1332
        %v1697 = vtanh.pop %v1523
        %v1698 = vtanh.pop %v1525
        %v1699 = vtanh.pop %v1141
        %v1700 = vtanh.pop %v1143
        %v1701 = vtanh.pop %v1334
        %v1702 = vtanh.pop %v1336
        %v1703 = vtanh.pop %v1527
        %v1704 = vtanh.pop %v1529
        %v1705 = vtanh.pop %v1147
        %v1706 = vtanh.pop %v1149
        %v1707 = vtanh.pop %v1340
        %v1708 = vtanh.pop %v1342
        %v1709 = vtanh.pop %v1533
        %v1710 = vtanh.pop %v1535
        %v1711 = vtanh.pop %v1151
        %v1712 = vtanh.pop %v1153
        %v1713 = vtanh.pop %v1344
        %v1714 = vtanh.pop %v1346
        %v1715 = vtanh.pop %v1537
        %v1716 = vtanh.pop %v1539
        %v1717 = vtanh.pop %v1157
        %v1718 = vtanh.pop %v1159
        %v1719 = vtanh.pop %v1350
        %v1720 = vtanh.pop %v1352
        %v1721 = vtanh.pop %v1543
        %v1722 = vtanh.pop %v1545
        %v1723 = vtanh.pop %v1161
        %v1724 = vtanh.pop %v1163
        %v1725 = vtanh.pop %v1354
        %v1726 = vtanh.pop %v1356
        %v1727 = vtanh.pop %v1547
        %v1728 = vtanh.pop %v1549
        %v1729 = vtanh.pop %v1167
        %v1730 = vtanh.pop %v1169
        %v1731 = vtanh.pop %v1360
        %v1732 = vtanh.pop %v1362
        %v1733 = vtanh.pop %v1553
        %v1734 = vtanh.pop %v1555
        %v1735 = vtanh.pop %v1171
        %v1736 = vtanh.pop %v1173
        %v1737 = vtanh.pop %v1364
        %v1738 = vtanh.pop %v1366
        %v1739 = vtanh.pop %v1557
        %v1740 = vtanh.pop %v1559
        %v1741 = vtanh.pop %v1177
        %v1742 = vtanh.pop %v1179
        %v1743 = vtanh.pop %v1370
        %v1744 = vtanh.pop %v1372
        %v1745 = vtanh.pop %v1563
        %v1746 = vtanh.pop %v1565
        %v1747 = vtanh.pop %v1181
        %v1748 = vtanh.pop %v1183
        %v1749 = vtanh.pop %v1374
        %v1750 = vtanh.pop %v1376
        %v1751 = vtanh.pop %v1567
        %v1752 = vtanh.pop %v1569
        %v1753 = vtanh.pop %v1187
        %v1754 = vtanh.pop %v1189
        %v1755 = vtanh.pop %v1380
        %v1756 = vtanh.pop %v1382
        %v1757 = vtanh.pop %v1573
        %v1758 = vtanh.pop %v1575
        %v1759 = vtanh.pop %v1191
        %v1760 = vtanh.pop %v1193
        %v1761 = vtanh.pop %v1384
        %v1762 = vtanh.pop %v1386
        %v1763 = vtanh.pop %v1577
        %v1764 = vtanh.pop %v1579
        %v1765 = vtanh.pop %v1197
        %v1766 = vtanh.pop %v1199
        %v1767 = vtanh.pop %v1390
        %v1768 = vtanh.pop %v1392
        %v1769 = vtanh.pop %v1583
        %v1770 = vtanh.pop %v1585
        %v1771 = vtanh.pop %v1201
        %v1772 = vtanh.pop %v1203
        %v1773 = vtanh.pop %v1394
        %v1774 = vtanh.pop %v1396
        %v1775 = vtanh.pop %v1587
        %v1776 = vtanh.pop %v1589
        %v1777 = vtanh.pop %v1207
        %v1778 = vtanh.pop %v1209
        %v1779 = vtanh.pop %v1400
        %v1780 = vtanh.pop %v1402
        %v1781 = vtanh.pop %v1593
        %v1782 = vtanh.pop %v1595
        %v1783 = vtanh.pop %v1211
        %v1784 = vtanh.pop %v1213
        %v1785 = vtanh.pop %v1404
        %v1786 = vtanh.pop %v1406
        %v1787 = vtanh.pop %v1597
        %v1788 = vtanh.pop %v1599
        %v1789 = vtanh.pop %v1217
        %v1790 = vtanh.pop %v1219
        %v1791 = vtanh.pop %v1410
        %v1792 = vtanh.pop %v1412
        %v1793 = vtanh.pop %v1603
        %v1794 = vtanh.pop %v1605
        %v1795 = vtanh.pop %v1221
        %v1796 = vtanh.pop %v1223
        %v1797 = vtanh.pop %v1414
        %v1798 = vtanh.pop %v1416
        %v1799 = vtanh.pop %v1607
        %v1800 = vtanh.pop %v1609
        %v1801 = vtanh.pop %v1227
        %v1802 = vtanh.pop %v1229
        %v1803 = vtanh.pop %v1420
        %v1804 = vtanh.pop %v1422
        %v1805 = vtanh.pop %v1613
        %v1806 = vtanh.pop %v1615
        %v1807 = vtanh.pop %v1231
        %v1808 = vtanh.pop %v1233
        %v1809 = vtanh.pop %v1424
        %v1810 = vtanh.pop %v1426
        %v1811 = vtanh.pop %v1617
        %v1812 = vtanh.pop %v1619
        %v1813 = vpack.c.bf16 %v1627, %v1621
        %v1814 = vpack.c.bf16 %v1628, %v1622
        %v1815 = vpack.c.bf16 %v1629, %v1623
        %v1816 = vpack.c.bf16 %v1630, %v1624
        %v1817 = vpack.c.bf16 %v1631, %v1625
        %v1818 = vpack.c.bf16 %v1632, %v1626
        %v1819 = vpack.c.bf16 %v1639, %v1633
        %v1820 = vpack.c.bf16 %v1640, %v1634
        %v1821 = vpack.c.bf16 %v1641, %v1635
        %v1822 = vpack.c.bf16 %v1642, %v1636
        %v1823 = vpack.c.bf16 %v1643, %v1637
        %v1824 = vpack.c.bf16 %v1644, %v1638
        %v1825 = vpack.c.bf16 %v1651, %v1645
        %v1826 = vpack.c.bf16 %v1652, %v1646
        %v1827 = vpack.c.bf16 %v1653, %v1647
        %v1828 = vpack.c.bf16 %v1654, %v1648
        %v1829 = vpack.c.bf16 %v1655, %v1649
        %v1830 = vpack.c.bf16 %v1656, %v1650
        %v1831 = vpack.c.bf16 %v1663, %v1657
        %v1832 = vpack.c.bf16 %v1664, %v1658
        %v1833 = vpack.c.bf16 %v1665, %v1659
        %v1834 = vpack.c.bf16 %v1666, %v1660
        %v1835 = vpack.c.bf16 %v1667, %v1661
        %v1836 = vpack.c.bf16 %v1668, %v1662
        %v1837 = vpack.c.bf16 %v1675, %v1669
        %v1838 = vpack.c.bf16 %v1676, %v1670
        %v1839 = vpack.c.bf16 %v1677, %v1671
        %v1840 = vpack.c.bf16 %v1678, %v1672
        %v1841 = vpack.c.bf16 %v1679, %v1673
        %v1842 = vpack.c.bf16 %v1680, %v1674
        %v1843 = vpack.c.bf16 %v1687, %v1681
        %v1844 = vpack.c.bf16 %v1688, %v1682
        %v1845 = vpack.c.bf16 %v1689, %v1683
        %v1846 = vpack.c.bf16 %v1690, %v1684
        %v1847 = vpack.c.bf16 %v1691, %v1685
        %v1848 = vpack.c.bf16 %v1692, %v1686
        %v1849 = vpack.c.bf16 %v1699, %v1693
        %v1850 = vpack.c.bf16 %v1700, %v1694
        %v1851 = vpack.c.bf16 %v1701, %v1695
        %v1852 = vpack.c.bf16 %v1702, %v1696
        %v1853 = vpack.c.bf16 %v1703, %v1697
        %v1854 = vpack.c.bf16 %v1704, %v1698
        %v1855 = vpack.c.bf16 %v1711, %v1705
        %v1856 = vpack.c.bf16 %v1712, %v1706
        %v1857 = vpack.c.bf16 %v1713, %v1707
        %v1858 = vpack.c.bf16 %v1714, %v1708
        %v1859 = vpack.c.bf16 %v1715, %v1709
        %v1860 = vpack.c.bf16 %v1716, %v1710
        %v1861 = vpack.c.bf16 %v1723, %v1717
        %v1862 = vpack.c.bf16 %v1724, %v1718
        %v1863 = vpack.c.bf16 %v1725, %v1719
        %v1864 = vpack.c.bf16 %v1726, %v1720
        %v1865 = vpack.c.bf16 %v1727, %v1721
        %v1866 = vpack.c.bf16 %v1728, %v1722
        %v1867 = vpack.c.bf16 %v1735, %v1729
        %v1868 = vpack.c.bf16 %v1736, %v1730
        %v1869 = vpack.c.bf16 %v1737, %v1731
        %v1870 = vpack.c.bf16 %v1738, %v1732
        %v1871 = vpack.c.bf16 %v1739, %v1733
        %v1872 = vpack.c.bf16 %v1740, %v1734
        %v1873 = vpack.c.bf16 %v1747, %v1741
        %v1874 = vpack.c.bf16 %v1748, %v1742
        %v1875 = vpack.c.bf16 %v1749, %v1743
        %v1876 = vpack.c.bf16 %v1750, %v1744
        %v1877 = vpack.c.bf16 %v1751, %v1745
        %v1878 = vpack.c.bf16 %v1752, %v1746
        %v1879 = vpack.c.bf16 %v1759, %v1753
        %v1880 = vpack.c.bf16 %v1760, %v1754
        %v1881 = vpack.c.bf16 %v1761, %v1755
        %v1882 = vpack.c.bf16 %v1762, %v1756
        %v1883 = vpack.c.bf16 %v1763, %v1757
        %v1884 = vpack.c.bf16 %v1764, %v1758
        %v1885 = vpack.c.bf16 %v1771, %v1765
        %v1886 = vpack.c.bf16 %v1772, %v1766
        %v1887 = vpack.c.bf16 %v1773, %v1767
        %v1888 = vpack.c.bf16 %v1774, %v1768
        %v1889 = vpack.c.bf16 %v1775, %v1769
        %v1890 = vpack.c.bf16 %v1776, %v1770
        %v1891 = vpack.c.bf16 %v1783, %v1777
        %v1892 = vpack.c.bf16 %v1784, %v1778
        %v1893 = vpack.c.bf16 %v1785, %v1779
        %v1894 = vpack.c.bf16 %v1786, %v1780
        %v1895 = vpack.c.bf16 %v1787, %v1781
        %v1896 = vpack.c.bf16 %v1788, %v1782
        %v1897 = vpack.c.bf16 %v1795, %v1789
        %v1898 = vpack.c.bf16 %v1796, %v1790
        %v1899 = vpack.c.bf16 %v1797, %v1791
        %v1900 = vpack.c.bf16 %v1798, %v1792
        %v1901 = vpack.c.bf16 %v1799, %v1793
        %v1902 = vpack.c.bf16 %v1800, %v1794
        %v1903 = vpack.c.bf16 %v1807, %v1801
        %v1904 = vpack.c.bf16 %v1808, %v1802
        %v1905 = vpack.c.bf16 %v1809, %v1803
        %v1906 = vpack.c.bf16 %v1810, %v1804
        %v1907 = vpack.c.bf16 %v1811, %v1805
        %v1908 = vpack.c.bf16 %v1812, %v1806
        %v1909 = vld [vmem:[%s4] sm:$0xff]
        %v1910 = vld [vmem:[%s4 + $0x8] sm:$0xff]
        %v1911 = vld [vmem:[%s4 + $0x10] sm:$0xff]
        %v1912 = vld [vmem:[%s4 + $0x18] sm:$0xff]
        %v1913 = vld [vmem:[%s4 + $0x20] sm:$0xff]
        %v1914 = vld [vmem:[%s4 + $0x28] sm:$0xff]
        %v1915 = vld [vmem:[%s4 + $0x30] sm:$0xff]
        %v1916 = vld [vmem:[%s4 + $0x38] sm:$0xff]
        %v1917 = vld [vmem:[%s4 + $0x40] sm:$0xff]
        %v1918 = vld [vmem:[%s4 + $0x48] sm:$0xff]
        %v1919 = vld [vmem:[%s4 + $0x50] sm:$0xff]
        %v1920 = vld [vmem:[%s4 + $0x58] sm:$0xff]
        %v1921 = vld [vmem:[%s4 + $0x60] sm:$0xff]
        %v1922 = vld [vmem:[%s4 + $0x68] sm:$0xff]
        %v1923 = vld [vmem:[%s4 + $0x70] sm:$0xff]
        %v1924 = vld [vmem:[%s4 + $0x78] sm:$0xff]
        %v1925 = vld [vmem:[%s5] sm:$0xff]
        %v1926 = vld [vmem:[%s5 + $0x8] sm:$0xff]
        %v1927 = vld [vmem:[%s5 + $0x10] sm:$0xff]
        %v1928 = vld [vmem:[%s5 + $0x18] sm:$0xff]
        %v1929 = vld [vmem:[%s5 + $0x20] sm:$0xff]
        %v1930 = vld [vmem:[%s5 + $0x28] sm:$0xff]
        %v1931 = vld [vmem:[%s5 + $0x30] sm:$0xff]
        %v1932 = vld [vmem:[%s5 + $0x38] sm:$0xff]
        %v1933 = vld [vmem:[%s5 + $0x40] sm:$0xff]
        %v1934 = vld [vmem:[%s5 + $0x48] sm:$0xff]
        %v1935 = vld [vmem:[%s5 + $0x50] sm:$0xff]
        %v1936 = vld [vmem:[%s5 + $0x58] sm:$0xff]
        %v1937 = vld [vmem:[%s5 + $0x60] sm:$0xff]
        %v1938 = vld [vmem:[%s5 + $0x68] sm:$0xff]
        %v1939 = vld [vmem:[%s5 + $0x70] sm:$0xff]
        %v1940 = vld [vmem:[%s5 + $0x78] sm:$0xff]
        %1942 = vset.pattern.permute.xlu0 0
        %1943 = vperm.xlu0 %1942, %v1925
        %v1944 = vpop.permute.xlu0 %1943
        %1947 = vset.pattern.permute.xlu0 0
        %1948 = vperm.xlu0 %1947, %v1926
        %v1949 = vpop.permute.xlu0 %1948
        %1952 = vset.pattern.permute.xlu0 0
        %1953 = vperm.xlu0 %1952, %v1927
        %v1954 = vpop.permute.xlu0 %1953
        %1957 = vset.pattern.permute.xlu0 0
        %1958 = vperm.xlu0 %1957, %v1928
        %v1959 = vpop.permute.xlu0 %1958
        %1962 = vset.pattern.permute.xlu0 0
        %1963 = vperm.xlu0 %1962, %v1929
        %v1964 = vpop.permute.xlu0 %1963
        %1967 = vset.pattern.permute.xlu0 0
        %1968 = vperm.xlu0 %1967, %v1930
        %v1969 = vpop.permute.xlu0 %1968
        %1972 = vset.pattern.permute.xlu0 0
        %1973 = vperm.xlu0 %1972, %v1931
        %v1974 = vpop.permute.xlu0 %1973
        %1977 = vset.pattern.permute.xlu0 0
        %1978 = vperm.xlu0 %1977, %v1932
        %v1979 = vpop.permute.xlu0 %1978
        %1982 = vset.pattern.permute.xlu0 0
        %1983 = vperm.xlu0 %1982, %v1933
        %v1984 = vpop.permute.xlu0 %1983
        %1987 = vset.pattern.permute.xlu0 0
        %1988 = vperm.xlu0 %1987, %v1934
        %v1989 = vpop.permute.xlu0 %1988
        %1992 = vset.pattern.permute.xlu0 0
        %1993 = vperm.xlu0 %1992, %v1935
        %v1994 = vpop.permute.xlu0 %1993
        %1997 = vset.pattern.permute.xlu0 0
        %1998 = vperm.xlu0 %1997, %v1936
        %v1999 = vpop.permute.xlu0 %1998
        %2002 = vset.pattern.permute.xlu0 0
        %2003 = vperm.xlu0 %2002, %v1937
        %v2004 = vpop.permute.xlu0 %2003
        %2007 = vset.pattern.permute.xlu0 0
        %2008 = vperm.xlu0 %2007, %v1938
        %v2009 = vpop.permute.xlu0 %2008
        %2012 = vset.pattern.permute.xlu0 0
        %2013 = vperm.xlu0 %2012, %v1939
        %v2014 = vpop.permute.xlu0 %2013
        %2017 = vset.pattern.permute.xlu0 0
        %2018 = vperm.xlu0 %2017, %v1940
        %v2019 = vpop.permute.xlu0 %2018
        %v2037 = vunpack.c.l.b16 %v1909
        %v2038 = vunpack.c.h.b16 %v1909
        %v2039 = vunpack.c.l.b16 %v1910
        %v2040 = vunpack.c.h.b16 %v1910
        %v2041 = vunpack.c.l.b16 %v1911
        %v2042 = vunpack.c.h.b16 %v1911
        %v2043 = vunpack.c.l.b16 %v1912
        %v2044 = vunpack.c.h.b16 %v1912
        %v2045 = vunpack.c.l.b16 %v1913
        %v2046 = vunpack.c.h.b16 %v1913
        %v2047 = vunpack.c.l.b16 %v1914
        %v2048 = vunpack.c.h.b16 %v1914
        %v2049 = vunpack.c.l.b16 %v1915
        %v2050 = vunpack.c.h.b16 %v1915
        %v2051 = vunpack.c.l.b16 %v1916
        %v2052 = vunpack.c.h.b16 %v1916
        %v2053 = vunpack.c.l.b16 %v1917
        %v2054 = vunpack.c.h.b16 %v1917
        %v2055 = vunpack.c.l.b16 %v1918
        %v2056 = vunpack.c.h.b16 %v1918
        %v2057 = vunpack.c.l.b16 %v1919
        %v2058 = vunpack.c.h.b16 %v1919
        %v2059 = vunpack.c.l.b16 %v1920
        %v2060 = vunpack.c.h.b16 %v1920
        %v2061 = vunpack.c.l.b16 %v1921
        %v2062 = vunpack.c.h.b16 %v1921
        %v2063 = vunpack.c.l.b16 %v1922
        %v2064 = vunpack.c.h.b16 %v1922
        %v2065 = vunpack.c.l.b16 %v1923
        %v2066 = vunpack.c.h.b16 %v1923
        %v2067 = vunpack.c.l.b16 %v1924
        %v2068 = vunpack.c.h.b16 %v1924
        %v2069 = vpack.c.b16 %v2039, %v2037
        %v2070 = vpack.c.b16 %v2040, %v2038
        %v2071 = vpack.c.b16 %v2043, %v2041
        %v2072 = vpack.c.b16 %v2044, %v2042
        %v2073 = vpack.c.b16 %v2047, %v2045
        %v2074 = vpack.c.b16 %v2048, %v2046
        %v2075 = vpack.c.b16 %v2051, %v2049
        %v2076 = vpack.c.b16 %v2052, %v2050
        %v2077 = vpack.c.b16 %v2055, %v2053
        %v2078 = vpack.c.b16 %v2056, %v2054
        %v2079 = vpack.c.b16 %v2059, %v2057
        %v2080 = vpack.c.b16 %v2060, %v2058
        %v2081 = vpack.c.b16 %v2063, %v2061
        %v2082 = vpack.c.b16 %v2064, %v2062
        %v2083 = vpack.c.b16 %v2067, %v2065
        %v2084 = vpack.c.b16 %v2068, %v2066
        %2101 = vmatprep.subr.bf16.mxu0 %v1814
        %2102 = vmatpush1.bf16.msra.mxu0 %v1813
        %2103 = vmatprep.subr.bf16.mxu0 %v1820
        %2104 = vmatpush1.bf16.msra.mxu0 %v1819
        %2105 = vmatprep.subr.bf16.mxu0 %v1826
        %2106 = vmatpush1.bf16.msra.mxu0 %v1825
        %2107 = vmatprep.subr.bf16.mxu0 %v1832
        %2108 = vmatpush1.bf16.msra.mxu0 %v1831
        %2109 = vmatprep.subr.bf16.mxu0 %v1838
        %2110 = vmatpush1.bf16.msra.mxu0 %v1837
        %2111 = vmatprep.subr.bf16.mxu0 %v1844
        %2112 = vmatpush1.bf16.msra.mxu0 %v1843
        %2113 = vmatprep.subr.bf16.mxu0 %v1850
        %2114 = vmatpush1.bf16.msra.mxu0 %v1849
        %2115 = vmatprep.subr.bf16.mxu0 %v1856
        %2116 = vmatpush1.bf16.msra.mxu0 %v1855
        %2117 = vmatprep.subr.bf16.mxu0 %v1862
        %2118 = vmatpush1.bf16.msra.mxu0 %v1861
        %2119 = vmatprep.subr.bf16.mxu0 %v1868
        %2120 = vmatpush1.bf16.msra.mxu0 %v1867
        %2121 = vmatprep.subr.bf16.mxu0 %v1874
        %2122 = vmatpush1.bf16.msra.mxu0 %v1873
        %2123 = vmatprep.subr.bf16.mxu0 %v1880
        %2124 = vmatpush1.bf16.msra.mxu0 %v1879
        %2125 = vmatprep.subr.bf16.mxu0 %v1886
        %2126 = vmatpush1.bf16.msra.mxu0 %v1885
        %2127 = vmatprep.subr.bf16.mxu0 %v1892
        %2128 = vmatpush1.bf16.msra.mxu0 %v1891
        %2129 = vmatprep.subr.bf16.mxu0 %v1898
        %2130 = vmatpush1.bf16.msra.mxu0 %v1897
        %2131 = vmatprep.subr.bf16.mxu0 %v1904
        %2132 = vmatpush1.bf16.msra.mxu0 %v1903
        %2133 = vmatprep.mubr.bf16.mxu0 %v2070
        %2134 = vmatmul.mubr.bf16.gmra.mrb[0].mxu0 %v2069
        %v2135 = vpop.f32.mrb[0].mxu0
        %v2136 = vadd.f32 %v1944, %v2135
        %v2137 = vpop.f32.mrb[0].mxu0
        %v2138 = vadd.f32 %v1944, %v2137
        %v2139 = vpop.f32.mrb[0].mxu0
        %v2140 = vadd.f32 %v1949, %v2139
        %v2141 = vpop.f32.mrb[0].mxu0
        %v2142 = vadd.f32 %v1949, %v2141
        %2143 = vmatprep.mubr.bf16.mxu0 %v2072
        %2144 = vmatmul.mubr.bf16.gmra.mrb[0].mxu0 %v2071
        %v2145 = vpop.f32.mrb[0].mxu0
        %v2146 = vadd.f32 %v1954, %v2145
        %v2147 = vpop.f32.mrb[0].mxu0
        %v2148 = vadd.f32 %v1954, %v2147
        %v2149 = vpop.f32.mrb[0].mxu0
        %v2150 = vadd.f32 %v1959, %v2149
        %v2151 = vpop.f32.mrb[0].mxu0
        %v2152 = vadd.f32 %v1959, %v2151
        %2153 = vmatprep.mubr.bf16.mxu0 %v2074
        %2154 = vmatmul.mubr.bf16.gmra.mrb[0].mxu0 %v2073
        %v2155 = vpop.f32.mrb[0].mxu0
        %v2156 = vadd.f32 %v1964, %v2155
        %v2157 = vpop.f32.mrb[0].mxu0
        %v2158 = vadd.f32 %v1964, %v2157
        %v2159 = vpop.f32.mrb[0].mxu0
        %v2160 = vadd.f32 %v1969, %v2159
        %v2161 = vpop.f32.mrb[0].mxu0
        %v2162 = vadd.f32 %v1969, %v2161
        %2163 = vmatprep.mubr.bf16.mxu0 %v2076
        %2164 = vmatmul.mubr.bf16.gmra.mrb[0].mxu0 %v2075
        %v2165 = vpop.f32.mrb[0].mxu0
        %v2166 = vadd.f32 %v1974, %v2165
        %v2167 = vpop.f32.mrb[0].mxu0
        %v2168 = vadd.f32 %v1974, %v2167
        %v2169 = vpop.f32.mrb[0].mxu0
        %v2170 = vadd.f32 %v1979, %v2169
        %v2171 = vpop.f32.mrb[0].mxu0
        %v2172 = vadd.f32 %v1979, %v2171
        %2173 = vmatprep.mubr.bf16.mxu0 %v2078
        %2174 = vmatmul.mubr.bf16.gmra.mrb[0].mxu0 %v2077
        %v2175 = vpop.f32.mrb[0].mxu0
        %v2176 = vadd.f32 %v1984, %v2175
        %v2177 = vpop.f32.mrb[0].mxu0
        %v2178 = vadd.f32 %v1984, %v2177
        %v2179 = vpop.f32.mrb[0].mxu0
        %v2180 = vadd.f32 %v1989, %v2179
        %v2181 = vpop.f32.mrb[0].mxu0
        %v2182 = vadd.f32 %v1989, %v2181
        %2183 = vmatprep.mubr.bf16.mxu0 %v2080
        %2184 = vmatmul.mubr.bf16.gmra.mrb[0].mxu0 %v2079
        %v2185 = vpop.f32.mrb[0].mxu0
        %v2186 = vadd.f32 %v1994, %v2185
        %v2187 = vpop.f32.mrb[0].mxu0
        %v2188 = vadd.f32 %v1994, %v2187
        %v2189 = vpop.f32.mrb[0].mxu0
        %v2190 = vadd.f32 %v1999, %v2189
        %v2191 = vpop.f32.mrb[0].mxu0
        %v2192 = vadd.f32 %v1999, %v2191
        %2193 = vmatprep.mubr.bf16.mxu0 %v2082
        %2194 = vmatmul.mubr.bf16.gmra.mrb[0].mxu0 %v2081
        %v2195 = vpop.f32.mrb[0].mxu0
        %v2196 = vadd.f32 %v2004, %v2195
        %v2197 = vpop.f32.mrb[0].mxu0
        %v2198 = vadd.f32 %v2004, %v2197
        %v2199 = vpop.f32.mrb[0].mxu0
        %v2200 = vadd.f32 %v2009, %v2199
        %v2201 = vpop.f32.mrb[0].mxu0
        %v2202 = vadd.f32 %v2009, %v2201
        %2203 = vmatprep.mubr.bf16.mxu0 %v2084
        %2204 = vmatmul.mubr.bf16.gmra.mrb[0].mxu0 %v2083
        %v2205 = vpop.f32.mrb[0].mxu0
        %v2206 = vadd.f32 %v2014, %v2205
        %v2207 = vpop.f32.mrb[0].mxu0
        %v2208 = vadd.f32 %v2014, %v2207
        %v2209 = vpop.f32.mrb[0].mxu0
        %v2210 = vadd.f32 %v2019, %v2209
        %v2211 = vpop.f32.mrb[0].mxu0
        %v2212 = vadd.f32 %v2019, %v2211
        %2213 = vdwg.mxu0
        %2214 = vmatprep.subr.bf16.mxu0 %v1816
        %2215 = vmatpush1.bf16.msra.mxu0 %v1815
        %2216 = vmatprep.subr.bf16.mxu0 %v1822
        %2217 = vmatpush1.bf16.msra.mxu0 %v1821
        %2218 = vmatprep.subr.bf16.mxu0 %v1828
        %2219 = vmatpush1.bf16.msra.mxu0 %v1827
        %2220 = vmatprep.subr.bf16.mxu0 %v1834
        %2221 = vmatpush1.bf16.msra.mxu0 %v1833
        %2222 = vmatprep.subr.bf16.mxu0 %v1840
        %2223 = vmatpush1.bf16.msra.mxu0 %v1839
        %2224 = vmatprep.subr.bf16.mxu0 %v1846
        %2225 = vmatpush1.bf16.msra.mxu0 %v1845
        %2226 = vmatprep.subr.bf16.mxu0 %v1852
        %2227 = vmatpush1.bf16.msra.mxu0 %v1851
        %2228 = vmatprep.subr.bf16.mxu0 %v1858
        %2229 = vmatpush1.bf16.msra.mxu0 %v1857
        %2230 = vmatprep.subr.bf16.mxu0 %v1864
        %2231 = vmatpush1.bf16.msra.mxu0 %v1863
        %2232 = vmatprep.subr.bf16.mxu0 %v1870
        %2233 = vmatpush1.bf16.msra.mxu0 %v1869
        %2234 = vmatprep.subr.bf16.mxu0 %v1876
        %2235 = vmatpush1.bf16.msra.mxu0 %v1875
        %2236 = vmatprep.subr.bf16.mxu0 %v1882
        %2237 = vmatpush1.bf16.msra.mxu0 %v1881
        %2238 = vmatprep.subr.bf16.mxu0 %v1888
        %2239 = vmatpush1.bf16.msra.mxu0 %v1887
        %2240 = vmatprep.subr.bf16.mxu0 %v1894
        %2241 = vmatpush1.bf16.msra.mxu0 %v1893
        %2242 = vmatprep.subr.bf16.mxu0 %v1900
        %2243 = vmatpush1.bf16.msra.mxu0 %v1899
        %2244 = vmatprep.subr.bf16.mxu0 %v1906
        %2245 = vmatpush1.bf16.msra.mxu0 %v1905
        %2246 = vmatprep.mubr.bf16.mxu0 %v2070
        %2247 = vmatmul.mubr.bf16.gmra.mrb[0].mxu0 %v2069
        %v2248 = vpop.f32.mrb[0].mxu0
        %v2249 = vadd.f32 %v1944, %v2248
        %v2250 = vpop.f32.mrb[0].mxu0
        %v2251 = vadd.f32 %v1944, %v2250
        %v2252 = vpop.f32.mrb[0].mxu0
        %v2253 = vadd.f32 %v1949, %v2252
        %v2254 = vpop.f32.mrb[0].mxu0
        %v2255 = vadd.f32 %v1949, %v2254
        %2256 = vmatprep.mubr.bf16.mxu0 %v2072
        %2257 = vmatmul.mubr.bf16.gmra.mrb[0].mxu0 %v2071
        %v2258 = vpop.f32.mrb[0].mxu0
        %v2259 = vadd.f32 %v1954, %v2258
        %v2260 = vpop.f32.mrb[0].mxu0
        %v2261 = vadd.f32 %v1954, %v2260
        %v2262 = vpop.f32.mrb[0].mxu0
        %v2263 = vadd.f32 %v1959, %v2262
        %v2264 = vpop.f32.mrb[0].mxu0
        %v2265 = vadd.f32 %v1959, %v2264
        %2266 = vmatprep.mubr.bf16.mxu0 %v2074
        %2267 = vmatmul.mubr.bf16.gmra.mrb[0].mxu0 %v2073
        %v2268 = vpop.f32.mrb[0].mxu0
        %v2269 = vadd.f32 %v1964, %v2268
        %v2270 = vpop.f32.mrb[0].mxu0
        %v2271 = vadd.f32 %v1964, %v2270
        %v2272 = vpop.f32.mrb[0].mxu0
        %v2273 = vadd.f32 %v1969, %v2272
        %v2274 = vpop.f32.mrb[0].mxu0
        %v2275 = vadd.f32 %v1969, %v2274
        %2276 = vmatprep.mubr.bf16.mxu0 %v2076
        %2277 = vmatmul.mubr.bf16.gmra.mrb[0].mxu0 %v2075
        %v2278 = vpop.f32.mrb[0].mxu0
        %v2279 = vadd.f32 %v1974, %v2278
        %v2280 = vpop.f32.mrb[0].mxu0
        %v2281 = vadd.f32 %v1974, %v2280
        %v2282 = vpop.f32.mrb[0].mxu0
        %v2283 = vadd.f32 %v1979, %v2282
        %v2284 = vpop.f32.mrb[0].mxu0
        %v2285 = vadd.f32 %v1979, %v2284
        %2286 = vmatprep.mubr.bf16.mxu0 %v2078
        %2287 = vmatmul.mubr.bf16.gmra.mrb[0].mxu0 %v2077
        %v2288 = vpop.f32.mrb[0].mxu0
        %v2289 = vadd.f32 %v1984, %v2288
        %v2290 = vpop.f32.mrb[0].mxu0
        %v2291 = vadd.f32 %v1984, %v2290
        %v2292 = vpop.f32.mrb[0].mxu0
        %v2293 = vadd.f32 %v1989, %v2292
        %v2294 = vpop.f32.mrb[0].mxu0
        %v2295 = vadd.f32 %v1989, %v2294
        %2296 = vmatprep.mubr.bf16.mxu0 %v2080
        %2297 = vmatmul.mubr.bf16.gmra.mrb[0].mxu0 %v2079
        %v2298 = vpop.f32.mrb[0].mxu0
        %v2299 = vadd.f32 %v1994, %v2298
        %v2300 = vpop.f32.mrb[0].mxu0
        %v2301 = vadd.f32 %v1994, %v2300
        %v2302 = vpop.f32.mrb[0].mxu0
        %v2303 = vadd.f32 %v1999, %v2302
        %v2304 = vpop.f32.mrb[0].mxu0
        %v2305 = vadd.f32 %v1999, %v2304
        %2306 = vmatprep.mubr.bf16.mxu0 %v2082
        %2307 = vmatmul.mubr.bf16.gmra.mrb[0].mxu0 %v2081
        %v2308 = vpop.f32.mrb[0].mxu0
        %v2309 = vadd.f32 %v2004, %v2308
        %v2310 = vpop.f32.mrb[0].mxu0
        %v2311 = vadd.f32 %v2004, %v2310
        %v2312 = vpop.f32.mrb[0].mxu0
        %v2313 = vadd.f32 %v2009, %v2312
        %v2314 = vpop.f32.mrb[0].mxu0
        %v2315 = vadd.f32 %v2009, %v2314
        %2316 = vmatprep.mubr.bf16.mxu0 %v2084
        %2317 = vmatmul.mubr.bf16.gmra.mrb[0].mxu0 %v2083
        %v2318 = vpop.f32.mrb[0].mxu0
        %v2319 = vadd.f32 %v2014, %v2318
        %v2320 = vpop.f32.mrb[0].mxu0
        %v2321 = vadd.f32 %v2014, %v2320
        %v2322 = vpop.f32.mrb[0].mxu0
        %v2323 = vadd.f32 %v2019, %v2322
        %v2324 = vpop.f32.mrb[0].mxu0
        %v2325 = vadd.f32 %v2019, %v2324
        %2326 = vdwg.mxu0
        %2327 = vmatprep.subr.bf16.mxu0 %v1818
        %2328 = vmatpush1.bf16.msra.mxu0 %v1817
        %2329 = vmatprep.subr.bf16.mxu0 %v1824
        %2330 = vmatpush1.bf16.msra.mxu0 %v1823
        %2331 = vmatprep.subr.bf16.mxu0 %v1830
        %2332 = vmatpush1.bf16.msra.mxu0 %v1829
        %2333 = vmatprep.subr.bf16.mxu0 %v1836
        %2334 = vmatpush1.bf16.msra.mxu0 %v1835
        %2335 = vmatprep.subr.bf16.mxu0 %v1842
        %2336 = vmatpush1.bf16.msra.mxu0 %v1841
        %2337 = vmatprep.subr.bf16.mxu0 %v1848
        %2338 = vmatpush1.bf16.msra.mxu0 %v1847
        %2339 = vmatprep.subr.bf16.mxu0 %v1854
        %2340 = vmatpush1.bf16.msra.mxu0 %v1853
        %2341 = vmatprep.subr.bf16.mxu0 %v1860
        %2342 = vmatpush1.bf16.msra.mxu0 %v1859
        %2343 = vmatprep.subr.bf16.mxu0 %v1866
        %2344 = vmatpush1.bf16.msra.mxu0 %v1865
        %2345 = vmatprep.subr.bf16.mxu0 %v1872
        %2346 = vmatpush1.bf16.msra.mxu0 %v1871
        %2347 = vmatprep.subr.bf16.mxu0 %v1878
        %2348 = vmatpush1.bf16.msra.mxu0 %v1877
        %2349 = vmatprep.subr.bf16.mxu0 %v1884
        %2350 = vmatpush1.bf16.msra.mxu0 %v1883
        %2351 = vmatprep.subr.bf16.mxu0 %v1890
        %2352 = vmatpush1.bf16.msra.mxu0 %v1889
        %2353 = vmatprep.subr.bf16.mxu0 %v1896
        %2354 = vmatpush1.bf16.msra.mxu0 %v1895
        %2355 = vmatprep.subr.bf16.mxu0 %v1902
        %2356 = vmatpush1.bf16.msra.mxu0 %v1901
        %2357 = vmatprep.subr.bf16.mxu0 %v1908
        %2358 = vmatpush1.bf16.msra.mxu0 %v1907
        %2359 = vmatprep.mubr.bf16.mxu0 %v2070
        %2360 = vmatmul.mubr.bf16.gmra.mrb[0].mxu0 %v2069
        %v2361 = vpop.f32.mrb[0].mxu0
        %v2362 = vadd.f32 %v1944, %v2361
        %v2363 = vpop.f32.mrb[0].mxu0
        %v2364 = vadd.f32 %v1944, %v2363
        %v2365 = vpop.f32.mrb[0].mxu0
        %v2366 = vadd.f32 %v1949, %v2365
        %v2367 = vpop.f32.mrb[0].mxu0
        %v2368 = vadd.f32 %v1949, %v2367
        %2369 = vmatprep.mubr.bf16.mxu0 %v2072
        %2370 = vmatmul.mubr.bf16.gmra.mrb[0].mxu0 %v2071
        %v2371 = vpop.f32.mrb[0].mxu0
        %v2372 = vadd.f32 %v1954, %v2371
        %v2373 = vpop.f32.mrb[0].mxu0
        %v2374 = vadd.f32 %v1954, %v2373
        %v2375 = vpop.f32.mrb[0].mxu0
        %v2376 = vadd.f32 %v1959, %v2375
        %v2377 = vpop.f32.mrb[0].mxu0
        %v2378 = vadd.f32 %v1959, %v2377
        %2379 = vmatprep.mubr.bf16.mxu0 %v2074
        %2380 = vmatmul.mubr.bf16.gmra.mrb[0].mxu0 %v2073
        %v2381 = vpop.f32.mrb[0].mxu0
        %v2382 = vadd.f32 %v1964, %v2381
        %v2383 = vpop.f32.mrb[0].mxu0
        %v2384 = vadd.f32 %v1964, %v2383
        %v2385 = vpop.f32.mrb[0].mxu0
        %v2386 = vadd.f32 %v1969, %v2385
        %v2387 = vpop.f32.mrb[0].mxu0
        %v2388 = vadd.f32 %v1969, %v2387
        %2389 = vmatprep.mubr.bf16.mxu0 %v2076
        %2390 = vmatmul.mubr.bf16.gmra.mrb[0].mxu0 %v2075
        %v2391 = vpop.f32.mrb[0].mxu0
        %v2392 = vadd.f32 %v1974, %v2391
        %v2393 = vpop.f32.mrb[0].mxu0
        %v2394 = vadd.f32 %v1974, %v2393
        %v2395 = vpop.f32.mrb[0].mxu0
        %v2396 = vadd.f32 %v1979, %v2395
        %v2397 = vpop.f32.mrb[0].mxu0
        %v2398 = vadd.f32 %v1979, %v2397
        %2399 = vmatprep.mubr.bf16.mxu0 %v2078
        %2400 = vmatmul.mubr.bf16.gmra.mrb[0].mxu0 %v2077
        %v2401 = vpop.f32.mrb[0].mxu0
        %v2402 = vadd.f32 %v1984, %v2401
        %v2403 = vpop.f32.mrb[0].mxu0
        %v2404 = vadd.f32 %v1984, %v2403
        %v2405 = vpop.f32.mrb[0].mxu0
        %v2406 = vadd.f32 %v1989, %v2405
        %v2407 = vpop.f32.mrb[0].mxu0
        %v2408 = vadd.f32 %v1989, %v2407
        %2409 = vmatprep.mubr.bf16.mxu0 %v2080
        %2410 = vmatmul.mubr.bf16.gmra.mrb[0].mxu0 %v2079
        %v2411 = vpop.f32.mrb[0].mxu0
        %v2412 = vadd.f32 %v1994, %v2411
        %v2413 = vpop.f32.mrb[0].mxu0
        %v2414 = vadd.f32 %v1994, %v2413
        %v2415 = vpop.f32.mrb[0].mxu0
        %v2416 = vadd.f32 %v1999, %v2415
        %v2417 = vpop.f32.mrb[0].mxu0
        %v2418 = vadd.f32 %v1999, %v2417
        %2419 = vmatprep.mubr.bf16.mxu0 %v2082
        %2420 = vmatmul.mubr.bf16.gmra.mrb[0].mxu0 %v2081
        %v2421 = vpop.f32.mrb[0].mxu0
        %v2422 = vadd.f32 %v2004, %v2421
        %v2423 = vpop.f32.mrb[0].mxu0
        %v2424 = vadd.f32 %v2004, %v2423
        %v2425 = vpop.f32.mrb[0].mxu0
        %v2426 = vadd.f32 %v2009, %v2425
        %v2427 = vpop.f32.mrb[0].mxu0
        %v2428 = vadd.f32 %v2009, %v2427
        %2429 = vmatprep.mubr.bf16.mxu0 %v2084
        %2430 = vmatmul.mubr.bf16.gmra.mrb[0].mxu0 %v2083
        %v2431 = vpop.f32.mrb[0].mxu0
        %v2432 = vadd.f32 %v2014, %v2431
        %v2433 = vpop.f32.mrb[0].mxu0
        %v2434 = vadd.f32 %v2014, %v2433
        %v2435 = vpop.f32.mrb[0].mxu0
        %v2436 = vadd.f32 %v2019, %v2435
        %v2437 = vpop.f32.mrb[0].mxu0
        %v2438 = vadd.f32 %v2019, %v2437
        %2439 = vdwg.mxu0
        %v2440 = vtanh.pop %v2136
        %v2441 = vtanh.pop %v2138
        %v2442 = vtanh.pop %v2249
        %v2443 = vtanh.pop %v2251
        %v2444 = vtanh.pop %v2362
        %v2445 = vtanh.pop %v2364
        %v2446 = vtanh.pop %v2140
        %v2447 = vtanh.pop %v2142
        %v2448 = vtanh.pop %v2253
        %v2449 = vtanh.pop %v2255
        %v2450 = vtanh.pop %v2366
        %v2451 = vtanh.pop %v2368
        %v2452 = vtanh.pop %v2146
        %v2453 = vtanh.pop %v2148
        %v2454 = vtanh.pop %v2259
        %v2455 = vtanh.pop %v2261
        %v2456 = vtanh.pop %v2372
        %v2457 = vtanh.pop %v2374
        %v2458 = vtanh.pop %v2150
        %v2459 = vtanh.pop %v2152
        %v2460 = vtanh.pop %v2263
        %v2461 = vtanh.pop %v2265
        %v2462 = vtanh.pop %v2376
        %v2463 = vtanh.pop %v2378
        %v2464 = vtanh.pop %v2156
        %v2465 = vtanh.pop %v2158
        %v2466 = vtanh.pop %v2269
        %v2467 = vtanh.pop %v2271
        %v2468 = vtanh.pop %v2382
        %v2469 = vtanh.pop %v2384
        %v2470 = vtanh.pop %v2160
        %v2471 = vtanh.pop %v2162
        %v2472 = vtanh.pop %v2273
        %v2473 = vtanh.pop %v2275
        %v2474 = vtanh.pop %v2386
        %v2475 = vtanh.pop %v2388
        %v2476 = vtanh.pop %v2166
        %v2477 = vtanh.pop %v2168
        %v2478 = vtanh.pop %v2279
        %v2479 = vtanh.pop %v2281
        %v2480 = vtanh.pop %v2392
        %v2481 = vtanh.pop %v2394
        %v2482 = vtanh.pop %v2170
        %v2483 = vtanh.pop %v2172
        %v2484 = vtanh.pop %v2283
        %v2485 = vtanh.pop %v2285
        %v2486 = vtanh.pop %v2396
        %v2487 = vtanh.pop %v2398
        %v2488 = vtanh.pop %v2176
        %v2489 = vtanh.pop %v2178
        %v2490 = vtanh.pop %v2289
        %v2491 = vtanh.pop %v2291
        %v2492 = vtanh.pop %v2402
        %v2493 = vtanh.pop %v2404
        %v2494 = vtanh.pop %v2180
        %v2495 = vtanh.pop %v2182
        %v2496 = vtanh.pop %v2293
        %v2497 = vtanh.pop %v2295
        %v2498 = vtanh.pop %v2406
        %v2499 = vtanh.pop %v2408
        %v2500 = vtanh.pop %v2186
        %v2501 = vtanh.pop %v2188
        %v2502 = vtanh.pop %v2299
        %v2503 = vtanh.pop %v2301
        %v2504 = vtanh.pop %v2412
        %v2505 = vtanh.pop %v2414
        %v2506 = vtanh.pop %v2190
        %v2507 = vtanh.pop %v2192
        %v2508 = vtanh.pop %v2303
        %v2509 = vtanh.pop %v2305
        %v2510 = vtanh.pop %v2416
        %v2511 = vtanh.pop %v2418
        %v2512 = vtanh.pop %v2196
        %v2513 = vtanh.pop %v2198
        %v2514 = vtanh.pop %v2309
        %v2515 = vtanh.pop %v2311
        %v2516 = vtanh.pop %v2422
        %v2517 = vtanh.pop %v2424
        %v2518 = vtanh.pop %v2200
        %v2519 = vtanh.pop %v2202
        %v2520 = vtanh.pop %v2313
        %v2521 = vtanh.pop %v2315
        %v2522 = vtanh.pop %v2426
        %v2523 = vtanh.pop %v2428
        %v2524 = vtanh.pop %v2206
        %v2525 = vtanh.pop %v2208
        %v2526 = vtanh.pop %v2319
        %v2527 = vtanh.pop %v2321
        %v2528 = vtanh.pop %v2432
        %v2529 = vtanh.pop %v2434
        %v2530 = vtanh.pop %v2210
        %v2531 = vtanh.pop %v2212
        %v2532 = vtanh.pop %v2323
        %v2533 = vtanh.pop %v2325
        %v2534 = vtanh.pop %v2436
        %v2535 = vtanh.pop %v2438
        %v2536 = vpack.c.bf16 %v2446, %v2440
        %v2537 = vpack.c.bf16 %v2447, %v2441
        %v2538 = vpack.c.bf16 %v2448, %v2442
        %v2539 = vpack.c.bf16 %v2449, %v2443
        %v2540 = vpack.c.bf16 %v2450, %v2444
        %v2541 = vpack.c.bf16 %v2451, %v2445
        %v2542 = vpack.c.bf16 %v2458, %v2452
        %v2543 = vpack.c.bf16 %v2459, %v2453
        %v2544 = vpack.c.bf16 %v2460, %v2454
        %v2545 = vpack.c.bf16 %v2461, %v2455
        %v2546 = vpack.c.bf16 %v2462, %v2456
        %v2547 = vpack.c.bf16 %v2463, %v2457
        %v2548 = vpack.c.bf16 %v2470, %v2464
        %v2549 = vpack.c.bf16 %v2471, %v2465
        %v2550 = vpack.c.bf16 %v2472, %v2466
        %v2551 = vpack.c.bf16 %v2473, %v2467
        %v2552 = vpack.c.bf16 %v2474, %v2468
        %v2553 = vpack.c.bf16 %v2475, %v2469
        %v2554 = vpack.c.bf16 %v2482, %v2476
        %v2555 = vpack.c.bf16 %v2483, %v2477
        %v2556 = vpack.c.bf16 %v2484, %v2478
        %v2557 = vpack.c.bf16 %v2485, %v2479
        %v2558 = vpack.c.bf16 %v2486, %v2480
        %v2559 = vpack.c.bf16 %v2487, %v2481
        %v2560 = vpack.c.bf16 %v2494, %v2488
        %v2561 = vpack.c.bf16 %v2495, %v2489
        %v2562 = vpack.c.bf16 %v2496, %v2490
        %v2563 = vpack.c.bf16 %v2497, %v2491
        %v2564 = vpack.c.bf16 %v2498, %v2492
        %v2565 = vpack.c.bf16 %v2499, %v2493
        %v2566 = vpack.c.bf16 %v2506, %v2500
        %v2567 = vpack.c.bf16 %v2507, %v2501
        %v2568 = vpack.c.bf16 %v2508, %v2502
        %v2569 = vpack.c.bf16 %v2509, %v2503
        %v2570 = vpack.c.bf16 %v2510, %v2504
        %v2571 = vpack.c.bf16 %v2511, %v2505
        %v2572 = vpack.c.bf16 %v2518, %v2512
        %v2573 = vpack.c.bf16 %v2519, %v2513
        %v2574 = vpack.c.bf16 %v2520, %v2514
        %v2575 = vpack.c.bf16 %v2521, %v2515
        %v2576 = vpack.c.bf16 %v2522, %v2516
        %v2577 = vpack.c.bf16 %v2523, %v2517
        %v2578 = vpack.c.bf16 %v2530, %v2524
        %v2579 = vpack.c.bf16 %v2531, %v2525
        %v2580 = vpack.c.bf16 %v2532, %v2526
        %v2581 = vpack.c.bf16 %v2533, %v2527
        %v2582 = vpack.c.bf16 %v2534, %v2528
        %v2583 = vpack.c.bf16 %v2535, %v2529
        %v2584 = vld [vmem:[%s6] sm:$0xf]
        %v2585 = vld [vmem:[%s7] sm:$0xff]
        %2587 = vset.pattern.permute.xlu0 0
        %2588 = vperm.xlu0 %2587, %v2585
        %v2589 = vpop.permute.xlu0 %2588
        %2591 = vmatprep.subr.bf16.mxu0 %v2537
        %2592 = vmatpush1.bf16.msra.mxu0 %v2536
        %2593 = vmatprep.subr.bf16.mxu0 %v2543
        %2594 = vmatpush1.bf16.msra.mxu0 %v2542
        %2595 = vmatprep.subr.bf16.mxu0 %v2549
        %2596 = vmatpush1.bf16.msra.mxu0 %v2548
        %2597 = vmatprep.subr.bf16.mxu0 %v2555
        %2598 = vmatpush1.bf16.msra.mxu0 %v2554
        %2599 = vmatprep.subr.bf16.mxu0 %v2561
        %2600 = vmatpush1.bf16.msra.mxu0 %v2560
        %2601 = vmatprep.subr.bf16.mxu0 %v2567
        %2602 = vmatpush1.bf16.msra.mxu0 %v2566
        %2603 = vmatprep.subr.bf16.mxu0 %v2573
        %2604 = vmatpush1.bf16.msra.mxu0 %v2572
        %2605 = vmatprep.subr.bf16.mxu0 %v2579
        %2606 = vmatpush1.bf16.msra.mxu0 %v2578
        %2607 = vmatprep.subr.bf16.mxu0 0
        %2608 = vmatpush1.bf16.msra.mxu0 0
        %2609 = vmatprep.subr.bf16.mxu0 0
        %2610 = vmatpush1.bf16.msra.mxu0 0
        %2611 = vmatprep.subr.bf16.mxu0 0
        %2612 = vmatpush1.bf16.msra.mxu0 0
        %2613 = vmatprep.subr.bf16.mxu0 0
        %2614 = vmatpush1.bf16.msra.mxu0 0
        %2615 = vmatprep.subr.bf16.mxu0 0
        %2616 = vmatpush1.bf16.msra.mxu0 0
        %2617 = vmatprep.subr.bf16.mxu0 0
        %2618 = vmatpush1.bf16.msra.mxu0 0
        %2619 = vmatprep.subr.bf16.mxu0 0
        %2620 = vmatpush1.bf16.msra.mxu0 0
        %2621 = vmatprep.subr.bf16.mxu0 0
        %2622 = vmatpush1.bf16.msra.mxu0 0
        %2623 = vmatprep.mubr.bf16.mxu0 0
        %2624 = vmatmul.mubr.bf16.gmra.mrb[0].mxu0 %v2584
        %v2625 = vpop.f32.mrb[0].mxu0
        %v2626 = vadd.f32 %v2589, %v2625
        %v2627 = vpop.f32.mrb[0].mxu0
        %v2628 = vadd.f32 %v2589, %v2627
        %v2629 = vpop.f32.mrb[0].mxu0
        %v2630 = vpop.f32.mrb[0].mxu0
        %2631 = vdwg.mxu0
        %2632 = vmatprep.subr.bf16.mxu0 %v2539
        %2633 = vmatpush1.bf16.msra.mxu0 %v2538
        %2634 = vmatprep.subr.bf16.mxu0 %v2545
        %2635 = vmatpush1.bf16.msra.mxu0 %v2544
        %2636 = vmatprep.subr.bf16.mxu0 %v2551
        %2637 = vmatpush1.bf16.msra.mxu0 %v2550
        %2638 = vmatprep.subr.bf16.mxu0 %v2557
        %2639 = vmatpush1.bf16.msra.mxu0 %v2556
        %2640 = vmatprep.subr.bf16.mxu0 %v2563
        %2641 = vmatpush1.bf16.msra.mxu0 %v2562
        %2642 = vmatprep.subr.bf16.mxu0 %v2569
        %2643 = vmatpush1.bf16.msra.mxu0 %v2568
        %2644 = vmatprep.subr.bf16.mxu0 %v2575
        %2645 = vmatpush1.bf16.msra.mxu0 %v2574
        %2646 = vmatprep.subr.bf16.mxu0 %v2581
        %2647 = vmatpush1.bf16.msra.mxu0 %v2580
        %2648 = vmatprep.subr.bf16.mxu0 0
        %2649 = vmatpush1.bf16.msra.mxu0 0
        %2650 = vmatprep.subr.bf16.mxu0 0
        %2651 = vmatpush1.bf16.msra.mxu0 0
        %2652 = vmatprep.subr.bf16.mxu0 0
        %2653 = vmatpush1.bf16.msra.mxu0 0
        %2654 = vmatprep.subr.bf16.mxu0 0
        %2655 = vmatpush1.bf16.msra.mxu0 0
        %2656 = vmatprep.subr.bf16.mxu0 0
        %2657 = vmatpush1.bf16.msra.mxu0 0
        %2658 = vmatprep.subr.bf16.mxu0 0
        %2659 = vmatpush1.bf16.msra.mxu0 0
        %2660 = vmatprep.subr.bf16.mxu0 0
        %2661 = vmatpush1.bf16.msra.mxu0 0
        %2662 = vmatprep.subr.bf16.mxu0 0
        %2663 = vmatpush1.bf16.msra.mxu0 0
        %2664 = vmatprep.mubr.bf16.mxu0 0
        %2665 = vmatmul.mubr.bf16.gmra.mrb[0].mxu0 %v2584
        %v2666 = vpop.f32.mrb[0].mxu0
        %v2667 = vadd.f32 %v2589, %v2666
        %v2668 = vpop.f32.mrb[0].mxu0
        %v2669 = vadd.f32 %v2589, %v2668
        %v2670 = vpop.f32.mrb[0].mxu0
        %v2671 = vpop.f32.mrb[0].mxu0
        %2672 = vdwg.mxu0
        %2673 = vmatprep.subr.bf16.mxu0 %v2541
        %2674 = vmatpush1.bf16.msra.mxu0 %v2540
        %2675 = vmatprep.subr.bf16.mxu0 %v2547
        %2676 = vmatpush1.bf16.msra.mxu0 %v2546
        %2677 = vmatprep.subr.bf16.mxu0 %v2553
        %2678 = vmatpush1.bf16.msra.mxu0 %v2552
        %2679 = vmatprep.subr.bf16.mxu0 %v2559
        %2680 = vmatpush1.bf16.msra.mxu0 %v2558
        %2681 = vmatprep.subr.bf16.mxu0 %v2565
        %2682 = vmatpush1.bf16.msra.mxu0 %v2564
        %2683 = vmatprep.subr.bf16.mxu0 %v2571
        %2684 = vmatpush1.bf16.msra.mxu0 %v2570
        %2685 = vmatprep.subr.bf16.mxu0 %v2577
        %2686 = vmatpush1.bf16.msra.mxu0 %v2576
        %2687 = vmatprep.subr.bf16.mxu0 %v2583
        %2688 = vmatpush1.bf16.msra.mxu0 %v2582
        %2689 = vmatprep.subr.bf16.mxu0 0
        %2690 = vmatpush1.bf16.msra.mxu0 0
        %2691 = vmatprep.subr.bf16.mxu0 0
        %2692 = vmatpush1.bf16.msra.mxu0 0
        %2693 = vmatprep.subr.bf16.mxu0 0
        %2694 = vmatpush1.bf16.msra.mxu0 0
        %2695 = vmatprep.subr.bf16.mxu0 0
        %2696 = vmatpush1.bf16.msra.mxu0 0
        %2697 = vmatprep.subr.bf16.mxu0 0
        %2698 = vmatpush1.bf16.msra.mxu0 0
        %2699 = vmatprep.subr.bf16.mxu0 0
        %2700 = vmatpush1.bf16.msra.mxu0 0
        %2701 = vmatprep.subr.bf16.mxu0 0
        %2702 = vmatpush1.bf16.msra.mxu0 0
        %2703 = vmatprep.subr.bf16.mxu0 0
        %2704 = vmatpush1.bf16.msra.mxu0 0
        %2705 = vmatprep.mubr.bf16.mxu0 0
        %2706 = vmatmul.mubr.bf16.gmra.mrb[0].mxu0 %v2584
        %v2707 = vpop.f32.mrb[0].mxu0
        %v2708 = vadd.f32 %v2589, %v2707
        %v2709 = vpop.f32.mrb[0].mxu0
        %v2710 = vadd.f32 %v2589, %v2709
        %v2711 = vpop.f32.mrb[0].mxu0
        %v2712 = vpop.f32.mrb[0].mxu0
        %2713 = vdwg.mxu0
        %v2714 = vtanh.pop %v2626
        %v2715 = vtanh.pop %v2628
        %v2716 = vtanh.pop %v2667
        %v2717 = vtanh.pop %v2669
        %v2718 = vtanh.pop %v2708
        %v2719 = vtanh.pop %v2710
        %v2720 = vld [vmem:[%s389] sm:$0xff]
        %v2721 = vld [vmem:[%s389 + $0x8] sm:$0xf]
        %v2728 = vcombine.low %v2714, %v2715
        %v2729 = vcombine.low %v2716, %v2717
        %v2731 = vunpack.c.l.s4 1983009808
        %v2732 = vunpack.c.0.s8 %v2731
        %v2733 = vlaneseq
        %v2734 = vshrl.u32 %v2733, 7
        %v2735 = vsub.s32 %v2732, %v2734
        %v2736 = vrot.slane %v2728, %v2735
        %v2738 = vunpack.c.l.s4 1983009808
        %v2739 = vunpack.c.0.s8 %v2738
        %v2740 = vlaneseq
        %v2741 = vshrl.u32 %v2740, 7
        %v2742 = vsub.s32 %v2739, %v2741
        %v2743 = vrot.slane %v2729, %v2742
        %v2744 = vcombine.low %v2736, %v2743
        %v2745 = vcombine.low %v2718, %v2719
        %v2747 = vunpack.c.l.s4 1983009808
        %v2748 = vunpack.c.0.s8 %v2747
        %v2749 = vlaneseq
        %v2750 = vshrl.u32 %v2749, 7
        %v2751 = vsub.s32 %v2748, %v2750
        %v2752 = vrot.slane %v2745, %v2751
        %v2755 = vsub.f32 %v2720, %v2744
        %v2756 = vsub.f32 %v2721, %v2752
        %v2757 = vmul.f32 %v2755, %v2755
        %v2758 = vmul.f32 %v2756, %v2756
        %v2759 = vld [vmem:[%s8] sm:$0x3]
        %2761 = vset.pattern.permute.xlu0 0
        %2762 = vperm.xlu0 %2761, %v2759
        %v2763 = vpop.permute.xlu0 %2762
        %v2765 = vunpack.c.l.s4 269488144
        %v2766 = vunpack.c.0.s8 %v2765
        %v2767 = vlaneseq
        %v2768 = vshrl.u32 %v2767, 7
        %v2769 = vsub.s32 %v2766, %v2768
        %v2770 = vrot.slane %v2763, %v2769
        %v2772 = vmul.f32 %v2757, %v2770
        %v2773 = vmul.f32 %v2758, %v2770
        %v2776 = vcombine.high %v2772, %v2772
        %v2778 = vunpack.c.l.s4 1983009808
        %v2779 = vunpack.c.0.s8 %v2778
        %v2780 = vlaneseq
        %v2781 = vshrl.u32 %v2780, 7
        %v2782 = vsub.s32 %v2779, %v2781
        %v2783 = vrot.slane %v2772, %v2782
        %v2785 = vunpack.c.l.s4 1983009808
        %v2786 = vunpack.c.0.s8 %v2785
        %v2787 = vlaneseq
        %v2788 = vshrl.u32 %v2787, 7
        %v2789 = vsub.s32 %v2786, %v2788
        %v2790 = vrot.slane %v2776, %v2789
        %v2791 = vcombine.high %v2783, %v2783
        %v2792 = vcombine.high %v2790, %v2790
        %v2794 = vunpack.c.l.s4 1983009808
        %v2795 = vunpack.c.0.s8 %v2794
        %v2796 = vlaneseq
        %v2797 = vshrl.u32 %v2796, 7
        %v2798 = vsub.s32 %v2795, %v2797
        %v2799 = vrot.slane %v2773, %v2798
        %v2800 = vcombine.high %v2799, %v2799
        %vm2807 = vcmask 1041408
        %v2808 = vsel %vm2807, %v2783, 0.0
        %v2809 = vrot.slane %v2808, 4
        %v2810 = vadd.f32 %v2808, %v2809
        %v2811 = vrot.slane %v2810, 2
        %v2812 = vadd.f32 %v2810, %v2811
        %v2813 = vrot.slane %v2812, 1
        %v2814 = vadd.f32 %v2812, %v2813
        %v2815 = vsel %vm2807, %v2791, 0.0
        %v2816 = vrot.slane %v2815, 4
        %v2817 = vadd.f32 %v2815, %v2816
        %v2818 = vrot.slane %v2817, 2
        %v2819 = vadd.f32 %v2817, %v2818
        %v2820 = vrot.slane %v2819, 1
        %v2821 = vadd.f32 %v2819, %v2820
        %v2822 = vsel %vm2807, %v2790, 0.0
        %v2823 = vrot.slane %v2822, 4
        %v2824 = vadd.f32 %v2822, %v2823
        %v2825 = vrot.slane %v2824, 2
        %v2826 = vadd.f32 %v2824, %v2825
        %v2827 = vrot.slane %v2826, 1
        %v2828 = vadd.f32 %v2826, %v2827
        %v2829 = vsel %vm2807, %v2792, 0.0
        %v2830 = vrot.slane %v2829, 4
        %v2831 = vadd.f32 %v2829, %v2830
        %v2832 = vrot.slane %v2831, 2
        %v2833 = vadd.f32 %v2831, %v2832
        %v2834 = vrot.slane %v2833, 1
        %v2835 = vadd.f32 %v2833, %v2834
        %v2836 = vsel %vm2807, %v2799, 0.0
        %v2837 = vrot.slane %v2836, 4
        %v2838 = vadd.f32 %v2836, %v2837
        %v2839 = vrot.slane %v2838, 2
        %v2840 = vadd.f32 %v2838, %v2839
        %v2841 = vrot.slane %v2840, 1
        %v2842 = vadd.f32 %v2840, %v2841
        %v2843 = vsel %vm2807, %v2800, 0.0
        %v2844 = vrot.slane %v2843, 4
        %v2845 = vadd.f32 %v2843, %v2844
        %v2846 = vrot.slane %v2845, 2
        %v2847 = vadd.f32 %v2845, %v2846
        %v2848 = vrot.slane %v2847, 1
        %v2849 = vadd.f32 %v2847, %v2848
        %v2850 = vmul.f32 %v2814, 0.5
        %v2851 = vmul.f32 %v2821, 0.5
        %v2852 = vmul.f32 %v2828, 0.5
        %v2853 = vmul.f32 %v2835, 0.5
        %v2854 = vmul.f32 %v2842, 0.5
        %v2855 = vmul.f32 %v2849, 0.5
        %v2856 = vsub.f32 %v2626, %v2850
        %v2857 = vsub.f32 %v2628, %v2851
        %v2858 = vsub.f32 %v2667, %v2852
        %v2859 = vsub.f32 %v2669, %v2853
        %v2860 = vsub.f32 %v2708, %v2854
        %v2861 = vsub.f32 %v2710, %v2855
        %v2868 = vcombine.low %v2856, %v2857
        %v2869 = vcombine.low %v2858, %v2859
        %v2870 = vcombine.low %v2860, %v2861
        %v2872 = vunpack.c.l.s4 1966171168
        %v2873 = vunpack.c.0.s8 %v2872
        %v2874 = vlaneseq
        %v2875 = vshrl.u32 %v2874, 7
        %v2876 = vsub.s32 %v2873, %v2875
        %v2877 = vrot.slane %v2868, %v2876
        %v2879 = vunpack.c.l.s4 1966171168
        %v2880 = vunpack.c.0.s8 %v2879
        %v2881 = vlaneseq
        %v2882 = vshrl.u32 %v2881, 7
        %v2883 = vsub.s32 %v2880, %v2882
        %v2884 = vrot.slane %v2869, %v2883
        %v2886 = vunpack.c.l.s4 1966171168
        %v2887 = vunpack.c.0.s8 %v2886
        %v2888 = vlaneseq
        %v2889 = vshrl.u32 %v2888, 7
        %v2890 = vsub.s32 %v2887, %v2889
        %v2891 = vrot.slane %v2870, %v2890
        %v2892 = vcombine.high %v2877, %v2884
        %v2893 = vcombine.high %v2891, %v2891
        %v2895 = vunpack.c.l.s4 1966171168
        %v2896 = vunpack.c.0.s8 %v2895
        %v2897 = vlaneseq
        %v2898 = vshrl.u32 %v2897, 7
        %v2899 = vsub.s32 %v2896, %v2898
        %v2900 = vrot.slane %v2892, %v2899
        %v2902 = vunpack.c.l.s4 1966171168
        %v2903 = vunpack.c.0.s8 %v2902
        %v2904 = vlaneseq
        %v2905 = vshrl.u32 %v2904, 7
        %v2906 = vsub.s32 %v2903, %v2905
        %v2907 = vrot.slane %v2893, %v2906
        %v2908 = vcombine.high %v2900, %v2907
        %v2910 = vlaneseq
        %vm2911 = vcmp.ge.s32.totalorder %v2910, 0
        %vm2912 = vcmp.lt.s32.totalorder %v2910, 768
        %vm2913 = vmand %vm2911, %vm2912
        %2914 = vst.msk [vmem:[%s366] ss:$2 sm:$0x3f] %vm2913, %v2908
        %v2921 = vcombine.low %v2626, %v2628
        %v2922 = vcombine.low %v2667, %v2669
        %v2923 = vcombine.low %v2708, %v2710
        %v2925 = vunpack.c.l.s4 1966171168
        %v2926 = vunpack.c.0.s8 %v2925
        %v2927 = vlaneseq
        %v2928 = vshrl.u32 %v2927, 7
        %v2929 = vsub.s32 %v2926, %v2928
        %v2930 = vrot.slane %v2921, %v2929
        %v2932 = vunpack.c.l.s4 1966171168
        %v2933 = vunpack.c.0.s8 %v2932
        %v2934 = vlaneseq
        %v2935 = vshrl.u32 %v2934, 7
        %v2936 = vsub.s32 %v2933, %v2935
        %v2937 = vrot.slane %v2922, %v2936
        %v2939 = vunpack.c.l.s4 1966171168
        %v2940 = vunpack.c.0.s8 %v2939
        %v2941 = vlaneseq
        %v2942 = vshrl.u32 %v2941, 7
        %v2943 = vsub.s32 %v2940, %v2942
        %v2944 = vrot.slane %v2923, %v2943
        %v2945 = vcombine.low %v2930, %v2937
        %v2947 = vunpack.c.l.s4 1966171168
        %v2948 = vunpack.c.0.s8 %v2947
        %v2949 = vlaneseq
        %v2950 = vshrl.u32 %v2949, 7
        %v2951 = vsub.s32 %v2948, %v2950
        %v2952 = vrot.slane %v2945, %v2951
        %v2954 = vunpack.c.l.s4 1966171168
        %v2955 = vunpack.c.0.s8 %v2954
        %v2956 = vlaneseq
        %v2957 = vshrl.u32 %v2956, 7
        %v2958 = vsub.s32 %v2955, %v2957
        %v2959 = vrot.slane %v2944, %v2958
        %v2960 = vcombine.high %v2952, %v2959
        %s2962 = scalar_lea.vmem %s366, 1 [#allocation2]
        %2963 = vst.msk [vmem:[%s2962] ss:$2 sm:$0x3f] %vm2913, %v2960
        %s2964 = sand.u32 %s230, 1
        %s2965 = scalar_lea.sflag [#allocation3], %s2964
        %s2966 = sand.u32 %s230, 1
        %s2967 = smul.addr %s2966, 12
        %s2968 = scalar_lea.vmem [#allocation2], %s2967
        // Predicated region
        $region57: #{tpu_custom_call.1} parent=55 // pred_check
          %p2969 = pneg %p240
        $region58: #{tpu_custom_call.1} parent=55 // pred_check_branch
          %2971 = sbr.rel (%p2969) target = $region60
        $region59: #{tpu_custom_call.1} parent=55 // pred_region
          %s2972 = smul.u32 6, %s23
          %s2973 = ssub.s32 21, %s2972
          %p2974 = scmp.lt.s32.totalorder %s2973, 6
          %s2975 = scalar_select %p2974, %s2973, 6
          %s2976 = smul.u32 32, %s2975
          %s2978 = ssub.s32 192, %s2976
          %2979 = vsyncadd %s2965, %s2978
          %p2980 = scmp.ne.s32.totalorder 0, %s2976
          %s2981 = smul.addr %s2972, 32
          %s2982 = scalar_lea.hbm %s9, %s2981
          %s2983 = smul.u32 %s2975, 2
          %s2984 = sshll.u32 %s2983, 4
          %s2985 = sshll.u32 %s2968, 4
          %s2986 = int_to_ptr.vmem [resolvable:$true] %s2985
          %2988 = dma.vmem_to_hbm [thread:$0]  (%p2980), %s2986, %s2984, %s2982, %s2965
        $region60: #{tpu_custom_call.1} parent=55 // pred_fallthru
          _
      $region56: #{tpu_custom_call.1} parent=5 // pred_fallthru
        _
      %p2989 = scmp.le.s32.totalorder 2, %s18
      // Predicated region
      $region61: #{tpu_custom_call.1} parent=5 // pred_check
        %p2990 = pneg %p2989
      $region62: #{tpu_custom_call.1} parent=5 // pred_check_branch
        %2992 = sbr.rel (%p2990) target = $region64
      $region63: #{tpu_custom_call.1} parent=5 // pred_region
        %s2993 = ssub.s32 %s18, 2
        // Predicated region
        $region65: #{tpu_custom_call.1} parent=63 // pred_check
          %p2994 = pneg %p246
        $region66: #{tpu_custom_call.1} parent=63 // pred_check_branch
          %2996 = sbr.rel (%p2994) target = $region68
        $region67: #{tpu_custom_call.1} parent=63 // pred_region
          %s2997 = sand.u32 %s231, 1
          %s2998 = scalar_lea.sflag [#allocation3], %s2997
          %s2999 = sand.u32 %s231, 1
          %s3000 = smul.addr %s2999, 12
          %s3001 = scalar_lea.vmem [#allocation2], %s3000
          %3002 = dma.done %s2998, 192
        $region68: #{tpu_custom_call.1} parent=63 // pred_fallthru
          _
      $region64: #{tpu_custom_call.1} parent=5 // pred_fallthru
        _
    $region6: #{tpu_custom_call.1} parent=1 // loop_footer
      %s22 = sadd.s32 1, %s18
    $region7: #{tpu_custom_call.1} parent=1 // loop_footer_branch
      %17 = sbr.rel target = $region3
    $region8: #{tpu_custom_call.1} parent=1 // loop_exit
      _
    %3003 = vsyncpa [#allocation3], 1
    %s3004 = scalar_lea.sflag [#allocation3], 1
    %3005 = vsyncpa %s3004, 1

</llo_original>
